<compile_context>
chip_gen: v6e
topology: v6e:2x2x1
jax: 0.10.0
libtpu: 0.0.40
codegen_flags: <defaults>
</compile_context>

<pallas_src>
import functools

import jax
import jax.numpy as jnp
from jax.experimental import pallas as pl
from jax.experimental.pallas import tpu as pltpu


def _round_up(x, m):
    return ((x + m - 1) // m) * m


def _sublane(dtype):
    """Sublane packing count: 8 for 32-bit, 16 for 16-bit, 32 for 8-bit."""
    return 8 * max(1, 4 // jnp.dtype(dtype).itemsize)


def _vmem_capacity_bytes(default=64 * 1024 * 1024):
    """Physical VMEM per TensorCore; conservative 64 MiB (v7x) fallback."""
    try:
        info = pltpu.get_tpu_info()
        for name in ("vmem_capacity_bytes", "vmem_bytes", "vmem_size_bytes"):
            v = getattr(info, name, None)
            if v:
                return int(v)
    except Exception:
        pass
    return default


# ---------------------------------------------------------------------------
# Fused kernel: whole TemporalBlock stack for one (batch, time-tile) grid step.
# ---------------------------------------------------------------------------
def _make_tcn_kernel(blocks, init_list, time_tile):
    tl = time_tile

    def kernel(x_ref, w_ref, b_ref, o_ref, *st_refs):
        # Zero the causal-history halos at the first time tile of each sequence
        # (the zero halo IS the causal left zero-padding).
        if init_list:
            @pl.when(pl.program_id(1) == 0)
            def _():
                for st_idx, c_pad, halo_pad in init_list:
                    st_refs[st_idx][:, :halo_pad] = jnp.zeros(
                        (c_pad, halo_pad), st_refs[st_idx].dtype)

        cdt = x_ref.dtype          # activation/weight dtype (bf16 ok); acc is f32

        def causal_conv(h, conv):
            """One folded causal dilated conv: y = W_folded @ slab + b (f32 acc)."""
            st_idx, halo_pad, shifts, w_off, w_rows, w_cols = conv
            if halo_pad == 0:
                # Every surviving tap has zero shift -> plain 1x1 conv, no history.
                slab = h
            else:
                st = st_refs[st_idx]                     # (C_pad, halo_pad + TL)
                st[:, halo_pad:] = h                     # lane-aligned full store
                pieces = [h if s == 0 else
                          st[:, halo_pad - s: halo_pad - s + tl] for s in shifts]
                slab = (pieces[0] if len(pieces) == 1
                        else jnp.concatenate(pieces, axis=0))  # sublane-aligned
                # Roll the causal history window forward for the next time tile
                # (fully lane-aligned load+store; value is read before overwrite).
                st[:, :halo_pad] = st[:, tl: tl + halo_pad]
            w = w_ref[w_off: w_off + w_rows, :w_cols]    # static, sublane-aligned
            b = b_ref[w_off: w_off + w_rows, :]          # (rows, 1) f32 bias
            return jnp.dot(w, slab, preferred_element_type=jnp.float32) + b

        h = x_ref[...]                                   # (C_in_pad, TL)
        for cout_pad, has_ds, conv1, conv2 in blocks:
            # conv1 (+ fused 1x1 downsample rows) in one MXU pass.
            y = causal_conv(h, conv1)
            if has_ds:
                h1 = jnp.maximum(y[:cout_pad], 0.0)
                res = y[cout_pad:]                       # downsample(x) + bias, f32
            else:
                h1 = jnp.maximum(y, 0.0)
                res = h                                  # identity residual (cdt)
            # TODO(synk): nn.Dropout omitted (eval/inference semantics -> identity).
            h2 = jnp.maximum(causal_conv(h1.astype(cdt), conv2), 0.0)
            h = jnp.maximum(h2 + res, 0.0).astype(cdt)

        o_ref[...] = h.astype(o_ref.dtype)

    return kernel


# ---------------------------------------------------------------------------
# Parameter init matching TemporalBlock.init_weights() (weight_norm == identity
# at init).
# ---------------------------------------------------------------------------
def init_tcn_params(key, num_inputs, num_channels, kernel_size):
    params = []
    cin = num_inputs
    for cout in num_channels:
        key, k1, k2, k3, k4, k5, k6 = jax.random.split(key, 7)
        has_ds = cin != cout
        params.append({
            "w1": 0.01 * jax.random.normal(k1, (cout, cin, kernel_size), jnp.float32),
            "b1": 0.01 * jax.random.normal(k2, (cout,), jnp.float32),
            "w2": 0.01 * jax.random.normal(k3, (cout, cout, kernel_size), jnp.float32),
            "b2": 0.01 * jax.random.normal(k4, (cout,), jnp.float32),
            "wd": (0.01 * jax.random.normal(k5, (cout, cin), jnp.float32)
                   if has_ds else None),
            "bd": (0.01 * jax.random.normal(k6, (cout,), jnp.float32)
                   if has_ds else None),
        })
        cin = cout
    return params


# ---------------------------------------------------------------------------
# TemporalConvNet wrapper (PyTorch-compatible NCL interface).
# ---------------------------------------------------------------------------
def temporal_conv_net(x_ncl, params, kernel_size, *, time_tile=None):
    """x_ncl: (N, C_in, L) -> (N, C_last, L), matching PyTorch TemporalConvNet."""
    assert kernel_size >= 2, "PyTorch TCN uses kernel_size >= 2"
    n, c_in, length = x_ncl.shape
    act_dtype = x_ncl.dtype
    isz = jnp.dtype(act_dtype).itemsize
    sub = _sublane(act_dtype)

    # ---- host-side padding: time -> lane multiple, channels -> sublane multiple.
    # Padded channels carry zero weights/bias, so they stay exactly zero through
    # every block; padded (trailing) time steps never feed valid outputs (causal).
    l_pad = _round_up(length, 128)
    c_in_pad = _round_up(c_in, sub)
    x = x_ncl
    if l_pad != length or c_in_pad != c_in:
        x = jnp.pad(x, ((0, 0), (0, c_in_pad - c_in), (0, l_pad - length)))

    # ---- fold taps (+ 1x1 downsample), pad channels, pack all weights/biases ----
    w_pieces, b_pieces = [], []
    row_off = 0

    def add_piece(w2d, b1d):
        nonlocal row_off
        off = row_off
        w_pieces.append(w2d)
        b_pieces.append(b1d.reshape(-1, 1).astype(jnp.float32))
        row_off += w2d.shape[0]
        return off, w2d.shape[0], w2d.shape[1]

    blocks_meta = []
    cin, cin_pad = c_in, c_in_pad
    for i, p in enumerate(params):
        dil = 2 ** i                         # static
        cout = p["w1"].shape[0]
        cout_pad = _round_up(cout, sub)
        has_ds = p["wd"] is not None
        # Drop taps whose causal shift can never reach real data.
        valid = tuple(j for j in range(kernel_size)
                      if (kernel_size - 1 - j) * dil < length)
        shifts = tuple((kernel_size - 1 - j) * dil for j in valid)
        halo = max(shifts)
        halo_pad = _round_up(halo, 128) if halo else 0

        # conv1, channel-padded then tap-folded: (Cout_pad[,+Cout_pad], nv*Cin_pad)
        w1p = jnp.zeros((cout_pad, cin_pad, kernel_size),
                        jnp.float32).at[:cout, :cin, :].set(p["w1"])
        w1f = jnp.concatenate([w1p[:, :, j] for j in valid], axis=1)
        b1p = jnp.zeros((cout_pad,), jnp.float32).at[:cout].set(p["b1"])
        if has_ds:
            # The 1x1 downsample reads only the unshifted tap; place it in the
            # matching slab columns so the residual rides the same MXU pass.
            wdp = jnp.zeros((cout_pad, cin_pad),
                            jnp.float32).at[:cout, :cin].set(p["wd"])
            pos = valid.index(kernel_size - 1)
            wds = jnp.zeros((cout_pad, len(valid) * cin_pad), jnp.float32
                            ).at[:, pos * cin_pad:(pos + 1) * cin_pad].set(wdp)
            w1c = jnp.concatenate([w1f, wds], axis=0)
            b1c = jnp.concatenate(
                [b1p, jnp.zeros((cout_pad,), jnp.float32).at[:cout].set(p["bd"])])
        else:
            w1c, b1c = w1f, b1p

        # conv2: (Cout_pad, nv*Cout_pad)
        w2p = jnp.zeros((cout_pad, cout_pad, kernel_size),
                        jnp.float32).at[:cout, :cout, :].set(p["w2"])
        w2f = jnp.concatenate([w2p[:, :, j] for j in valid], axis=1)
        b2p = jnp.zeros((cout_pad,), jnp.float32).at[:cout].set(p["b2"])

        c1_meta = dict(c_pad=cin_pad, halo_pad=halo_pad, shifts=shifts,
                       piece=add_piece(w1c, b1c))
        c2_meta = dict(c_pad=cout_pad, halo_pad=halo_pad, shifts=shifts,
                       piece=add_piece(w2f, b2p))
        blocks_meta.append(dict(cout_pad=cout_pad, has_ds=has_ds, nv=len(valid),
                                conv1=c1_meta, conv2=c2_meta))
        cin, cin_pad = cout, cout_pad

    c_last, c_last_pad = cin, cin_pad

    # One lane-dense weight pack (activation dtype -> native bf16 MXU path) and
    # one f32 bias column (row offsets shared with the weight pack).
    wcols = _round_up(max(w.shape[1] for w in w_pieces), 128)
    wpack = jnp.zeros((row_off, wcols), jnp.float32)
    r = 0
    for w in w_pieces:
        wpack = wpack.at[r:r + w.shape[0], :w.shape[1]].set(w)
        r += w.shape[0]
    wpack = wpack.astype(act_dtype)
    bpack = jnp.concatenate(b_pieces, axis=0)           # (rows, 1) f32

    # ---- time-tile selection, budgeted against this generation's VMEM ----------
    vmem_cap = _vmem_capacity_bytes()
    fixed = 2 * wpack.size * isz + 2 * bpack.size * 4 + (2 << 20)   # + slack
    per_lane = 2 * (c_in_pad + c_last_pad) * isz        # double-buffered in/out
    temp = 0
    for blk in blocks_meta:
        cop, cip, nv = blk["cout_pad"], blk["conv1"]["c_pad"], blk["nv"]
        if blk["conv1"]["halo_pad"]:
            per_lane += cip * isz                       # conv1 staging buffer
        if blk["conv2"]["halo_pad"]:
            per_lane += cop * isz                       # conv2 staging buffer
        fixed += (blk["conv1"]["halo_pad"] * cip +
                  blk["conv2"]["halo_pad"] * cop) * isz
        temp = max(temp, nv * max(cip, cop) * isz       # folded slab
                   + 5 * cop * 4                        # y / h1 / h2 / res (f32)
                   + (cip + cop) * isz)                 # h in/out
    per_lane += temp

    if time_tile is None:
        budget = int(0.5 * vmem_cap)
        tl, t = 128, 128
        while t <= min(l_pad, 2048):
            if l_pad % t == 0 and fixed + per_lane * t <= budget:
                tl = t
            t += 128
    else:
        tl = time_tile
        assert tl % 128 == 0 and l_pad % tl == 0, (tl, l_pad)
    n_tiles = l_pad // tl
    vmem_limit = int(0.75 * vmem_cap)                   # raise the scoped limit

    # ---- persistent causal-history scratch + static per-block kernel config ----
    scratch_shapes, init_list, blocks = [], [], []
    for blk in blocks_meta:
        convs = []
        for cm in (blk["conv1"], blk["conv2"]):
            if cm["halo_pad"]:
                st_idx = len(scratch_shapes)
                scratch_shapes.append(
                    pltpu.VMEM((cm["c_pad"], cm["halo_pad"] + tl), act_dtype))
                init_list.append((st_idx, cm["c_pad"], cm["halo_pad"]))
            else:
                st_idx = -1
            off, rows, cols = cm["piece"]
            convs.append((st_idx, cm["halo_pad"], cm["shifts"], off, rows, cols))
        blocks.append((blk["cout_pad"], blk["has_ds"], convs[0], convs[1]))

    kernel = _make_tcn_kernel(tuple(blocks), tuple(init_list), tl)

    out = pl.pallas_call(
        kernel,
        out_shape=jax.ShapeDtypeStruct((n, c_last_pad, l_pad), act_dtype),
        grid=(n, n_tiles),
        in_specs=[
            pl.BlockSpec((None, c_in_pad, tl), lambda b, t: (b, 0, t)),
            pl.BlockSpec(wpack.shape, lambda b, t: (0, 0)),
            pl.BlockSpec(bpack.shape, lambda b, t: (0, 0)),
        ],
        out_specs=pl.BlockSpec((None, c_last_pad, tl), lambda b, t: (b, 0, t)),
        scratch_shapes=scratch_shapes,
        compiler_params=pltpu.CompilerParams(
            # Batch is independent (megacore-shardable); time is a sequential scan
            # because of the causal history carried in VMEM scratch.
            # TODO(synk): when N == 1 on v7x (2 TensorCores), the second core idles;
            # splitting the sequence into halves with a recomputed receptive-field
            # halo would recover it.
            dimension_semantics=("parallel", "arbitrary"),
            vmem_limit_bytes=vmem_limit,
        ),
    )(x, wpack, bpack)

    return out[:, :c_last, :length]


# ---------------------------------------------------------------------------
# Pure-JAX reference (same math, no Pallas) for a correctness check.
# ---------------------------------------------------------------------------
def _causal_conv_ref(x, w, b, dilation):
    cout, _, k = w.shape
    length = x.shape[2]
    out = jnp.zeros((x.shape[0], cout, length), jnp.float32)
    for j in range(k):
        shift = (k - 1 - j) * dilation
        xs = x if shift == 0 else jnp.pad(
            x, ((0, 0), (0, 0), (shift, 0)))[:, :, :length]
        out = out + jnp.einsum("ncl,oc->nol", xs.astype(jnp.float32), w[:, :, j])
    return out + b[None, :, None]


def _tcn_ref(x_ncl, params, kernel_size):
    x = x_ncl.astype(jnp.float32)
    for i, p in enumerate(params):
        d = 2 ** i
        h1 = jnp.maximum(_causal_conv_ref(x, p["w1"], p["b1"], d), 0.0)
        h2 = jnp.maximum(_causal_conv_ref(h1, p["w2"], p["b2"], d), 0.0)
        if p["wd"] is None:
            res = x
        else:
            res = jnp.einsum("ncl,oc->nol", x, p["wd"]) + p["bd"][None, :, None]
        x = jnp.maximum(h2 + res, 0.0)
    return x


if __name__ == "__main__":
    key = jax.random.PRNGKey(0)
    kx, kp = jax.random.split(key)

    # Small shapes that exercise: channel padding (3 -> 8), time padding (200 -> 256),
    # causal carry across 2 time tiles, fused 1x1 downsample (blocks 0/1), identity
    # residual (block 2), and multi-tap (k=3) dilated convs.
    batch, num_inputs, length = 2, 3, 200
    num_channels = (8, 16, 16)
    kernel_size = 3

    x = jax.random.normal(kx, (batch, num_inputs, length), jnp.float32)  # NCL
    params = init_tcn_params(kp, num_inputs, num_channels, kernel_size)

    fwd = jax.jit(functools.partial(temporal_conv_net, kernel_size=kernel_size,
                                    time_tile=128))
    out = fwd(x, params)
    jax.block_until_ready(out)
    assert out.shape == (batch, num_channels[-1], length), out.shape

    ref = _tcn_ref(x, params, kernel_size)
    max_err = float(jnp.max(jnp.abs(out.astype(jnp.float32) - ref)))
    assert jnp.allclose(out.astype(jnp.float32), ref, rtol=1e-2, atol=1e-5), max_err

    # bf16 activation path (native bf16 x bf16 MXU, auto time tile): smoke test.
    fwd_bf16 = jax.jit(functools.partial(temporal_conv_net, kernel_size=kernel_size))
    out_bf16 = fwd_bf16(x.astype(jnp.bfloat16), params)
    jax.block_until_ready(out_bf16)
    assert out_bf16.shape == (batch, num_channels[-1], length), out_bf16.shape
    assert bool(jnp.all(jnp.isfinite(out_bf16.astype(jnp.float32))))

    print("KERNEL_OK")
</pallas_src>

<mosaic_0001>
module attributes {stable_mosaic.version = 11 : i64} {
  func.func @kernel(%arg0: i32, %arg1: i32, %arg2: memref<1x8x128xf32, #tpu.memory_space<vmem>>, %arg3: memref<104x128xf32, #tpu.memory_space<vmem>>, %arg4: memref<104x1xf32, #tpu.memory_space<vmem>>, %arg5: memref<1x16x128xf32, #tpu.memory_space<vmem>>, %arg6: memref<8x256xf32, #tpu.memory_space<vmem>>, %arg7: memref<8x256xf32, #tpu.memory_space<vmem>>, %arg8: memref<8x256xf32, #tpu.memory_space<vmem>>, %arg9: memref<16x256xf32, #tpu.memory_space<vmem>>, %arg10: memref<16x256xf32, #tpu.memory_space<vmem>>, %arg11: memref<16x256xf32, #tpu.memory_space<vmem>>) attributes {dimension_semantics = [#tpu.dimension_semantics<parallel>, #tpu.dimension_semantics<arbitrary>], iteration_bounds = array<i64: 2, 2>, scalar_prefetch = 0 : i64, scratch_operands = 6 : i64, tpu.core_type = #tpu.core_type<tc>, window_params = [{transform_indices = @transform_0, window_bounds = array<i64: 1, 8, 128>}, {pipeline_mode = #tpu.pipeline_mode<synchronous>, transform_indices = @transform_1, window_bounds = array<i64: 104, 128>}, {pipeline_mode = #tpu.pipeline_mode<synchronous>, transform_indices = @transform_2, window_bounds = array<i64: 104, 1>}, {transform_indices = @transform_3, window_bounds = array<i64: 1, 16, 128>}]} {
    %c0_i32 = arith.constant 0 : i32
    %0 = arith.cmpi eq, %arg1, %c0_i32 : i32
    %1 = arith.extui %0 : i1 to i32
    %c0_i32_0 = arith.constant 0 : i32
    %2 = arith.cmpi ne, %1, %c0_i32_0 : i32
    scf.if %2 {
      %cst_94 = arith.constant 0.000000e+00 : f32
      %99 = vector.broadcast %cst_94 : f32 to vector<8x128xf32>
      %c0_95 = arith.constant 0 : index
      %c0_96 = arith.constant 0 : index
      %100 = vector.load %arg6[%c0_95, %c0_96] : memref<8x256xf32, #tpu.memory_space<vmem>>, vector<8x128xf32>
      tpu.vector_store %arg6[%c0_95, %c0_96], %99 {strides = array<i32>} : memref<8x256xf32, #tpu.memory_space<vmem>>, vector<8x128xf32>,
      %cst_97 = arith.constant 0.000000e+00 : f32
      %101 = vector.broadcast %cst_97 : f32 to vector<8x128xf32>
      %c0_98 = arith.constant 0 : index
      %c0_99 = arith.constant 0 : index
      %102 = vector.load %arg7[%c0_98, %c0_99] : memref<8x256xf32, #tpu.memory_space<vmem>>, vector<8x128xf32>
      tpu.vector_store %arg7[%c0_98, %c0_99], %101 {strides = array<i32>} : memref<8x256xf32, #tpu.memory_space<vmem>>, vector<8x128xf32>,
      %cst_100 = arith.constant 0.000000e+00 : f32
      %103 = vector.broadcast %cst_100 : f32 to vector<8x128xf32>
      %c0_101 = arith.constant 0 : index
      %c0_102 = arith.constant 0 : index
      %104 = vector.load %arg8[%c0_101, %c0_102] : memref<8x256xf32, #tpu.memory_space<vmem>>, vector<8x128xf32>
      tpu.vector_store %arg8[%c0_101, %c0_102], %103 {strides = array<i32>} : memref<8x256xf32, #tpu.memory_space<vmem>>, vector<8x128xf32>,
      %cst_103 = arith.constant 0.000000e+00 : f32
      %105 = vector.broadcast %cst_103 : f32 to vector<16x128xf32>
      %c0_104 = arith.constant 0 : index
      %c0_105 = arith.constant 0 : index
      %106 = vector.load %arg9[%c0_104, %c0_105] : memref<16x256xf32, #tpu.memory_space<vmem>>, vector<16x128xf32>
      tpu.vector_store %arg9[%c0_104, %c0_105], %105 {strides = array<i32>} : memref<16x256xf32, #tpu.memory_space<vmem>>, vector<16x128xf32>,
      %cst_106 = arith.constant 0.000000e+00 : f32
      %107 = vector.broadcast %cst_106 : f32 to vector<16x128xf32>
      %c0_107 = arith.constant 0 : index
      %c0_108 = arith.constant 0 : index
      %108 = vector.load %arg10[%c0_107, %c0_108] : memref<16x256xf32, #tpu.memory_space<vmem>>, vector<16x128xf32>
      tpu.vector_store %arg10[%c0_107, %c0_108], %107 {strides = array<i32>} : memref<16x256xf32, #tpu.memory_space<vmem>>, vector<16x128xf32>,
      %cst_109 = arith.constant 0.000000e+00 : f32
      %109 = vector.broadcast %cst_109 : f32 to vector<16x128xf32>
      %c0_110 = arith.constant 0 : index
      %c0_111 = arith.constant 0 : index
      %110 = vector.load %arg11[%c0_110, %c0_111] : memref<16x256xf32, #tpu.memory_space<vmem>>, vector<16x128xf32>
      tpu.vector_store %arg11[%c0_110, %c0_111], %109 {strides = array<i32>} : memref<16x256xf32, #tpu.memory_space<vmem>>, vector<16x128xf32>,
    } else {
    }
    %c0 = arith.constant 0 : index
    %c0_1 = arith.constant 0 : index
    %c0_2 = arith.constant 0 : index
    %3 = vector.load %arg2[%c0, %c0_1, %c0_2] : memref<1x8x128xf32, #tpu.memory_space<vmem>>, vector<1x8x128xf32>
    %4 = vector.shape_cast %3 : vector<1x8x128xf32> to vector<8x128xf32>
    %c0_3 = arith.constant 0 : index
    %c128 = arith.constant 128 : index
    %5 = vector.load %arg6[%c0_3, %c128] : memref<8x256xf32, #tpu.memory_space<vmem>>, vector<8x128xf32>
    tpu.vector_store %arg6[%c0_3, %c128], %4 {strides = array<i32>} : memref<8x256xf32, #tpu.memory_space<vmem>>, vector<8x128xf32>,
    %c0_4 = arith.constant 0 : index
    %c126 = arith.constant 126 : index
    %6 = vector.load %arg6[%c0_4, %c126] : memref<8x256xf32, #tpu.memory_space<vmem>>, vector<8x128xf32>
    %c0_5 = arith.constant 0 : index
    %c127 = arith.constant 127 : index
    %7 = vector.load %arg6[%c0_5, %c127] : memref<8x256xf32, #tpu.memory_space<vmem>>, vector<8x128xf32>
    %8 = tpu.concatenate %6, %7, %4 in 0 : vector<8x128xf32>, vector<8x128xf32>, vector<8x128xf32> -> vector<24x128xf32>
    %c0_6 = arith.constant 0 : index
    %c128_7 = arith.constant 128 : index
    %9 = vector.load %arg6[%c0_6, %c128_7] : memref<8x256xf32, #tpu.memory_space<vmem>>, vector<8x128xf32>
    %c0_8 = arith.constant 0 : index
    %c0_9 = arith.constant 0 : index
    %10 = vector.load %arg6[%c0_8, %c0_9] : memref<8x256xf32, #tpu.memory_space<vmem>>, vector<8x128xf32>
    tpu.vector_store %arg6[%c0_8, %c0_9], %9 {strides = array<i32>} : memref<8x256xf32, #tpu.memory_space<vmem>>, vector<8x128xf32>,
    %c0_10 = arith.constant 0 : index
    %c0_11 = arith.constant 0 : index
    %11 = vector.load %arg3[%c0_10, %c0_11] : memref<104x128xf32, #tpu.memory_space<vmem>>, vector<16x24xf32>
    %c0_12 = arith.constant 0 : index
    %c0_13 = arith.constant 0 : index
    %12 = vector.load %arg4[%c0_12, %c0_13] : memref<104x1xf32, #tpu.memory_space<vmem>>, vector<16x1xf32>
    %cst = arith.constant dense<0.000000e+00> : vector<16x128xf32>
    %13 = tpu.matmul %11, %8, %cst {dimension_numbers = #tpu.dot_dimension_numbers<[1], [0], [0], [1], [0, 0, 1, 1], [], []>} : vector<16x24xf32>, vector<24x128xf32>, vector<16x128xf32> -> vector<16x128xf32>
    %14 = vector.broadcast %12 : vector<16x1xf32> to vector<16x128xf32>
    %15 = arith.addf %13, %14 : vector<16x128xf32>
    %16 = vector.extract_strided_slice %15 {offsets = [0, 0], sizes = [8, 128], strides = [1, 1]} : vector<16x128xf32> to vector<8x128xf32>
    %cst_14 = arith.constant 0.000000e+00 : f32
    %17 = vector.broadcast %cst_14 : f32 to vector<8x128xf32>
    %18 = arith.maximumf %16, %17 : vector<8x128xf32>
    %19 = vector.extract_strided_slice %15 {offsets = [8, 0], sizes = [8, 128], strides = [1, 1]} : vector<16x128xf32> to vector<8x128xf32>
    %c0_15 = arith.constant 0 : index
    %c128_16 = arith.constant 128 : index
    %20 = vector.load %arg7[%c0_15, %c128_16] : memref<8x256xf32, #tpu.memory_space<vmem>>, vector<8x128xf32>
    tpu.vector_store %arg7[%c0_15, %c128_16], %18 {strides = array<i32>} : memref<8x256xf32, #tpu.memory_space<vmem>>, vector<8x128xf32>,
    %c0_17 = arith.constant 0 : index
    %c126_18 = arith.constant 126 : index
    %21 = vector.load %arg7[%c0_17, %c126_18] : memref<8x256xf32, #tpu.memory_space<vmem>>, vector<8x128xf32>
    %c0_19 = arith.constant 0 : index
    %c127_20 = arith.constant 127 : index
    %22 = vector.load %arg7[%c0_19, %c127_20] : memref<8x256xf32, #tpu.memory_space<vmem>>, vector<8x128xf32>
    %23 = tpu.concatenate %21, %22, %18 in 0 : vector<8x128xf32>, vector<8x128xf32>, vector<8x128xf32> -> vector<24x128xf32>
    %c0_21 = arith.constant 0 : index
    %c128_22 = arith.constant 128 : index
    %24 = vector.load %arg7[%c0_21, %c128_22] : memref<8x256xf32, #tpu.memory_space<vmem>>, vector<8x128xf32>
    %c0_23 = arith.constant 0 : index
    %c0_24 = arith.constant 0 : index
    %25 = vector.load %arg7[%c0_23, %c0_24] : memref<8x256xf32, #tpu.memory_space<vmem>>, vector<8x128xf32>
    tpu.vector_store %arg7[%c0_23, %c0_24], %24 {strides = array<i32>} : memref<8x256xf32, #tpu.memory_space<vmem>>, vector<8x128xf32>,
    %c16 = arith.constant 16 : index
    %c0_25 = arith.constant 0 : index
    %26 = vector.load %arg3[%c16, %c0_25] : memref<104x128xf32, #tpu.memory_space<vmem>>, vector<8x24xf32>
    %c16_26 = arith.constant 16 : index
    %c0_27 = arith.constant 0 : index
    %27 = vector.load %arg4[%c16_26, %c0_27] : memref<104x1xf32, #tpu.memory_space<vmem>>, vector<8x1xf32>
    %cst_28 = arith.constant dense<0.000000e+00> : vector<8x128xf32>
    %28 = tpu.matmul %26, %23, %cst_28 {dimension_numbers = #tpu.dot_dimension_numbers<[1], [0], [0], [1], [0, 0, 1, 1], [], []>} : vector<8x24xf32>, vector<24x128xf32>, vector<8x128xf32> -> vector<8x128xf32>
    %29 = vector.broadcast %27 : vector<8x1xf32> to vector<8x128xf32>
    %30 = arith.addf %28, %29 : vector<8x128xf32>
    %cst_29 = arith.constant 0.000000e+00 : f32
    %31 = vector.broadcast %cst_29 : f32 to vector<8x128xf32>
    %32 = arith.maximumf %30, %31 : vector<8x128xf32>
    %33 = arith.addf %32, %19 : vector<8x128xf32>
    %cst_30 = arith.constant 0.000000e+00 : f32
    %34 = vector.broadcast %cst_30 : f32 to vector<8x128xf32>
    %35 = arith.maximumf %33, %34 : vector<8x128xf32>
    %c0_31 = arith.constant 0 : index
    %c128_32 = arith.constant 128 : index
    %36 = vector.load %arg8[%c0_31, %c128_32] : memref<8x256xf32, #tpu.memory_space<vmem>>, vector<8x128xf32>
    tpu.vector_store %arg8[%c0_31, %c128_32], %35 {strides = array<i32>} : memref<8x256xf32, #tpu.memory_space<vmem>>, vector<8x128xf32>,
    %c0_33 = arith.constant 0 : index
    %c124 = arith.constant 124 : index
    %37 = vector.load %arg8[%c0_33, %c124] : memref<8x256xf32, #tpu.memory_space<vmem>>, vector<8x128xf32>
    %c0_34 = arith.constant 0 : index
    %c126_35 = arith.constant 126 : index
    %38 = vector.load %arg8[%c0_34, %c126_35] : memref<8x256xf32, #tpu.memory_space<vmem>>, vector<8x128xf32>
    %39 = tpu.concatenate %37, %38, %35 in 0 : vector<8x128xf32>, vector<8x128xf32>, vector<8x128xf32> -> vector<24x128xf32>
    %c0_36 = arith.constant 0 : index
    %c128_37 = arith.constant 128 : index
    %40 = vector.load %arg8[%c0_36, %c128_37] : memref<8x256xf32, #tpu.memory_space<vmem>>, vector<8x128xf32>
    %c0_38 = arith.constant 0 : index
    %c0_39 = arith.constant 0 : index
    %41 = vector.load %arg8[%c0_38, %c0_39] : memref<8x256xf32, #tpu.memory_space<vmem>>, vector<8x128xf32>
    tpu.vector_store %arg8[%c0_38, %c0_39], %40 {strides = array<i32>} : memref<8x256xf32, #tpu.memory_space<vmem>>, vector<8x128xf32>,
    %c24 = arith.constant 24 : index
    %c0_40 = arith.constant 0 : index
    %42 = vector.load %arg3[%c24, %c0_40] : memref<104x128xf32, #tpu.memory_space<vmem>>, vector<32x24xf32>
    %c24_41 = arith.constant 24 : index
    %c0_42 = arith.constant 0 : index
    %43 = vector.load %arg4[%c24_41, %c0_42] : memref<104x1xf32, #tpu.memory_space<vmem>>, vector<32x1xf32>
    %cst_43 = arith.constant dense<0.000000e+00> : vector<32x128xf32>
    %44 = tpu.matmul %42, %39, %cst_43 {dimension_numbers = #tpu.dot_dimension_numbers<[1], [0], [0], [1], [0, 0, 1, 1], [], []>} : vector<32x24xf32>, vector<24x128xf32>, vector<32x128xf32> -> vector<32x128xf32>
    %45 = vector.broadcast %43 : vector<32x1xf32> to vector<32x128xf32>
    %46 = arith.addf %44, %45 : vector<32x128xf32>
    %47 = vector.extract_strided_slice %46 {offsets = [0, 0], sizes = [16, 128], strides = [1, 1]} : vector<32x128xf32> to vector<16x128xf32>
    %cst_44 = arith.constant 0.000000e+00 : f32
    %48 = vector.broadcast %cst_44 : f32 to vector<16x128xf32>
    %49 = arith.maximumf %47, %48 : vector<16x128xf32>
    %50 = vector.extract_strided_slice %46 {offsets = [16, 0], sizes = [16, 128], strides = [1, 1]} : vector<32x128xf32> to vector<16x128xf32>
    %c0_45 = arith.constant 0 : index
    %c128_46 = arith.constant 128 : index
    %51 = vector.load %arg9[%c0_45, %c128_46] : memref<16x256xf32, #tpu.memory_space<vmem>>, vector<16x128xf32>
    tpu.vector_store %arg9[%c0_45, %c128_46], %49 {strides = array<i32>} : memref<16x256xf32, #tpu.memory_space<vmem>>, vector<16x128xf32>,
    %c0_47 = arith.constant 0 : index
    %c124_48 = arith.constant 124 : index
    %52 = vector.load %arg9[%c0_47, %c124_48] : memref<16x256xf32, #tpu.memory_space<vmem>>, vector<16x128xf32>
    %c0_49 = arith.constant 0 : index
    %c126_50 = arith.constant 126 : index
    %53 = vector.load %arg9[%c0_49, %c126_50] : memref<16x256xf32, #tpu.memory_space<vmem>>, vector<16x128xf32>
    %54 = tpu.concatenate %52, %53, %49 in 0 : vector<16x128xf32>, vector<16x128xf32>, vector<16x128xf32> -> vector<48x128xf32>
    %c0_51 = arith.constant 0 : index
    %c128_52 = arith.constant 128 : index
    %55 = vector.load %arg9[%c0_51, %c128_52] : memref<16x256xf32, #tpu.memory_space<vmem>>, vector<16x128xf32>
    %c0_53 = arith.constant 0 : index
    %c0_54 = arith.constant 0 : index
    %56 = vector.load %arg9[%c0_53, %c0_54] : memref<16x256xf32, #tpu.memory_space<vmem>>, vector<16x128xf32>
    tpu.vector_store %arg9[%c0_53, %c0_54], %55 {strides = array<i32>} : memref<16x256xf32, #tpu.memory_space<vmem>>, vector<16x128xf32>,
    %c56 = arith.constant 56 : index
    %c0_55 = arith.constant 0 : index
    %57 = vector.load %arg3[%c56, %c0_55] : memref<104x128xf32, #tpu.memory_space<vmem>>, vector<16x48xf32>
    %c56_56 = arith.constant 56 : index
    %c0_57 = arith.constant 0 : index
    %58 = vector.load %arg4[%c56_56, %c0_57] : memref<104x1xf32, #tpu.memory_space<vmem>>, vector<16x1xf32>
    %cst_58 = arith.constant dense<0.000000e+00> : vector<16x128xf32>
    %59 = tpu.matmul %57, %54, %cst_58 {dimension_numbers = #tpu.dot_dimension_numbers<[1], [0], [0], [1], [0, 0, 1, 1], [], []>} : vector<16x48xf32>, vector<48x128xf32>, vector<16x128xf32> -> vector<16x128xf32>
    %60 = vector.broadcast %58 : vector<16x1xf32> to vector<16x128xf32>
    %61 = arith.addf %59, %60 : vector<16x128xf32>
    %cst_59 = arith.constant 0.000000e+00 : f32
    %62 = vector.broadcast %cst_59 : f32 to vector<16x128xf32>
    %63 = arith.maximumf %61, %62 : vector<16x128xf32>
    %64 = arith.addf %63, %50 : vector<16x128xf32>
    %cst_60 = arith.constant 0.000000e+00 : f32
    %65 = vector.broadcast %cst_60 : f32 to vector<16x128xf32>
    %66 = arith.maximumf %64, %65 : vector<16x128xf32>
    %c0_61 = arith.constant 0 : index
    %c128_62 = arith.constant 128 : index
    %67 = vector.load %arg10[%c0_61, %c128_62] : memref<16x256xf32, #tpu.memory_space<vmem>>, vector<16x128xf32>
    tpu.vector_store %arg10[%c0_61, %c128_62], %66 {strides = array<i32>} : memref<16x256xf32, #tpu.memory_space<vmem>>, vector<16x128xf32>,
    %c0_63 = arith.constant 0 : index
    %c120 = arith.constant 120 : index
    %68 = vector.load %arg10[%c0_63, %c120] : memref<16x256xf32, #tpu.memory_space<vmem>>, vector<16x128xf32>
    %c0_64 = arith.constant 0 : index
    %c124_65 = arith.constant 124 : index
    %69 = vector.load %arg10[%c0_64, %c124_65] : memref<16x256xf32, #tpu.memory_space<vmem>>, vector<16x128xf32>
    %70 = tpu.concatenate %68, %69, %66 in 0 : vector<16x128xf32>, vector<16x128xf32>, vector<16x128xf32> -> vector<48x128xf32>
    %c0_66 = arith.constant 0 : index
    %c128_67 = arith.constant 128 : index
    %71 = vector.load %arg10[%c0_66, %c128_67] : memref<16x256xf32, #tpu.memory_space<vmem>>, vector<16x128xf32>
    %c0_68 = arith.constant 0 : index
    %c0_69 = arith.constant 0 : index
    %72 = vector.load %arg10[%c0_68, %c0_69] : memref<16x256xf32, #tpu.memory_space<vmem>>, vector<16x128xf32>
    tpu.vector_store %arg10[%c0_68, %c0_69], %71 {strides = array<i32>} : memref<16x256xf32, #tpu.memory_space<vmem>>, vector<16x128xf32>,
    %c72 = arith.constant 72 : index
    %c0_70 = arith.constant 0 : index
    %73 = vector.load %arg3[%c72, %c0_70] : memref<104x128xf32, #tpu.memory_space<vmem>>, vector<16x48xf32>
    %c72_71 = arith.constant 72 : index
    %c0_72 = arith.constant 0 : index
    %74 = vector.load %arg4[%c72_71, %c0_72] : memref<104x1xf32, #tpu.memory_space<vmem>>, vector<16x1xf32>
    %cst_73 = arith.constant dense<0.000000e+00> : vector<16x128xf32>
    %75 = tpu.matmul %73, %70, %cst_73 {dimension_numbers = #tpu.dot_dimension_numbers<[1], [0], [0], [1], [0, 0, 1, 1], [], []>} : vector<16x48xf32>, vector<48x128xf32>, vector<16x128xf32> -> vector<16x128xf32>
    %76 = vector.broadcast %74 : vector<16x1xf32> to vector<16x128xf32>
    %77 = arith.addf %75, %76 : vector<16x128xf32>
    %cst_74 = arith.constant 0.000000e+00 : f32
    %78 = vector.broadcast %cst_74 : f32 to vector<16x128xf32>
    %79 = arith.maximumf %77, %78 : vector<16x128xf32>
    %c0_75 = arith.constant 0 : index
    %c128_76 = arith.constant 128 : index
    %80 = vector.load %arg11[%c0_75, %c128_76] : memref<16x256xf32, #tpu.memory_space<vmem>>, vector<16x128xf32>
    tpu.vector_store %arg11[%c0_75, %c128_76], %79 {strides = array<i32>} : memref<16x256xf32, #tpu.memory_space<vmem>>, vector<16x128xf32>,
    %c0_77 = arith.constant 0 : index
    %c120_78 = arith.constant 120 : index
    %81 = vector.load %arg11[%c0_77, %c120_78] : memref<16x256xf32, #tpu.memory_space<vmem>>, vector<16x128xf32>
    %c0_79 = arith.constant 0 : index
    %c124_80 = arith.constant 124 : index
    %82 = vector.load %arg11[%c0_79, %c124_80] : memref<16x256xf32, #tpu.memory_space<vmem>>, vector<16x128xf32>
    %83 = tpu.concatenate %81, %82, %79 in 0 : vector<16x128xf32>, vector<16x128xf32>, vector<16x128xf32> -> vector<48x128xf32>
    %c0_81 = arith.constant 0 : index
    %c128_82 = arith.constant 128 : index
    %84 = vector.load %arg11[%c0_81, %c128_82] : memref<16x256xf32, #tpu.memory_space<vmem>>, vector<16x128xf32>
    %c0_83 = arith.constant 0 : index
    %c0_84 = arith.constant 0 : index
    %85 = vector.load %arg11[%c0_83, %c0_84] : memref<16x256xf32, #tpu.memory_space<vmem>>, vector<16x128xf32>
    tpu.vector_store %arg11[%c0_83, %c0_84], %84 {strides = array<i32>} : memref<16x256xf32, #tpu.memory_space<vmem>>, vector<16x128xf32>,
    %c88 = arith.constant 88 : index
    %c0_85 = arith.constant 0 : index
    %86 = vector.load %arg3[%c88, %c0_85] : memref<104x128xf32, #tpu.memory_space<vmem>>, vector<16x48xf32>
    %c88_86 = arith.constant 88 : index
    %c0_87 = arith.constant 0 : index
    %87 = vector.load %arg4[%c88_86, %c0_87] : memref<104x1xf32, #tpu.memory_space<vmem>>, vector<16x1xf32>
    %cst_88 = arith.constant dense<0.000000e+00> : vector<16x128xf32>
    %88 = tpu.matmul %86, %83, %cst_88 {dimension_numbers = #tpu.dot_dimension_numbers<[1], [0], [0], [1], [0, 0, 1, 1], [], []>} : vector<16x48xf32>, vector<48x128xf32>, vector<16x128xf32> -> vector<16x128xf32>
    %89 = vector.broadcast %87 : vector<16x1xf32> to vector<16x128xf32>
    %90 = arith.addf %88, %89 : vector<16x128xf32>
    %cst_89 = arith.constant 0.000000e+00 : f32
    %91 = vector.broadcast %cst_89 : f32 to vector<16x128xf32>
    %92 = arith.maximumf %90, %91 : vector<16x128xf32>
    %93 = arith.addf %92, %66 : vector<16x128xf32>
    %cst_90 = arith.constant 0.000000e+00 : f32
    %94 = vector.broadcast %cst_90 : f32 to vector<16x128xf32>
    %95 = arith.maximumf %93, %94 : vector<16x128xf32>
    %c0_91 = arith.constant 0 : index
    %c0_92 = arith.constant 0 : index
    %c0_93 = arith.constant 0 : index
    %96 = vector.load %arg5[%c0_91, %c0_92, %c0_93] : memref<1x16x128xf32, #tpu.memory_space<vmem>>, vector<1x16x128xf32>
    %97 = vector.shape_cast %96 : vector<1x16x128xf32> to vector<16x128xf32>
    %98 = vector.shape_cast %95 : vector<16x128xf32> to vector<1x16x128xf32>
    tpu.vector_store %arg5[%c0_91, %c0_92, %c0_93], %98 {strides = array<i32>} : memref<1x16x128xf32, #tpu.memory_space<vmem>>, vector<1x16x128xf32>,
    return
  }
  func.func @transform_0(%arg0: i32, %arg1: i32) -> (i32, i32, i32) {
    %c0_i32 = arith.constant 0 : i32
    %c0_i32_0 = arith.constant 0 : i32
    return %arg0, %c0_i32, %arg1 : i32, i32, i32
  }
  func.func @transform_1(%arg0: i32, %arg1: i32) -> (i32, i32) {
    %c0_i32 = arith.constant 0 : i32
    %c0_i32_0 = arith.constant 0 : i32
    %c0_i32_1 = arith.constant 0 : i32
    return %c0_i32, %c0_i32_0 : i32, i32
  }
  func.func @transform_2(%arg0: i32, %arg1: i32) -> (i32, i32) {
    %c0_i32 = arith.constant 0 : i32
    %c0_i32_0 = arith.constant 0 : i32
    %c0_i32_1 = arith.constant 0 : i32
    return %c0_i32, %c0_i32_0 : i32, i32
  }
  func.func @transform_3(%arg0: i32, %arg1: i32) -> (i32, i32, i32) {
    %c0_i32 = arith.constant 0 : i32
    %c0_i32_0 = arith.constant 0 : i32
    return %arg0, %c0_i32, %arg1 : i32, i32, i32
  }
}

</mosaic_0001>

<llo_original>
// kernel: temporal_conv_net.1
$region0: #{temporal_conv_net.1}
  #allocation0 [shape = 'u32[]', space=smem, size = 0x4, offset = 0x4, fixed_abs, tag = 'smem constant byte address 0x4 - core index']
  #allocation1 [shape = 'u32[144,128]{1,0:T(1,128)}', space=vmem, size = 0x12000, scoped, tag = 'internal scratch']
  #allocation2 [shape = 'f32[8,256]{1,0:T(8,128)}', space=vmem, size = 0x2000, scoped, tag = 'scratch operand']
  #allocation3 [shape = 'f32[8,256]{1,0:T(8,128)}', space=vmem, size = 0x2000, scoped, tag = 'scratch operand']
  #allocation4 [shape = 'f32[8,256]{1,0:T(8,128)}', space=vmem, size = 0x2000, scoped, tag = 'scratch operand']
  #allocation5 [shape = 'f32[16,256]{1,0:T(8,128)}', space=vmem, size = 0x4000, scoped, tag = 'scratch operand']
  #allocation6 [shape = 'f32[16,256]{1,0:T(8,128)}', space=vmem, size = 0x4000, scoped, tag = 'scratch operand']
  #allocation7 [shape = 'f32[16,256]{1,0:T(8,128)}', space=vmem, size = 0x4000, scoped, tag = 'scratch operand']
  %s0 = inlined_call_operand.vmem [shape: f32[2,8,256], index: 0, kind: input, shape index: {}]
  %s1 = inlined_call_operand.vmem [shape: f32[104,128], index: 1, kind: input, shape index: {}]
  %s2 = inlined_call_operand.vmem [shape: f32[104,1], index: 2, kind: input, shape index: {}]
  %s3 = inlined_call_operand.hbm [shape: f32[2,16,256], index: 3, kind: output, shape index: {}]
  %s4 = sld [smem:[#allocation0]]
  $region49: #{temporal_conv_net.1} parent=0
    _
  %s6 = ssub.s32 1, %s4
  %s7 = scalar_select 0, %s6, %s4
  $region1: #{temporal_conv_net.1} parent=0
    #allocation8 [shape = 'u8[16384]{0}', space=vmem, size = 0x4000, scoped, tag = 'output window, operand 0']
    #allocation9 [shape = 's32[2]{0}', space=sflag, size = 0x8, scoped, tag = 'scoped memory for temporal_conv_net.1']
    %8 = vsyncpa [#allocation9], 0
    %s9 = scalar_lea.sflag [#allocation9], 1
    %10 = vsyncpa %s9, 0
    loop: start=0, step=1, limit=6
    $region2: #{temporal_conv_net.1} parent=1 // loop_pre_header
      _
    $region3: #{temporal_conv_net.1} parent=1 // loop_header
      %s12 = sphi 0, %s16
      %p13 = scmp.ge.s32.totalorder %s12, 6
      %s19 = sphi 0, %s31
      %s20 = sphi 0, %s27
      %s21 = sphi 0, %s19
      %s22 = sphi 0, %s20
      %s23 = sphi 0, %s21
      %s24 = sphi 0, %s22
      %s36 = sphi 0, %s38
      %s39 = sphi 0, %s36
      %s40 = sphi 0, %s39
      %s56 = sphi 0, %s40
      %s60 = sphi 0, %s60
      %s62 = sphi 0, %s60
      %s63 = sphi 0, %s62
      %s77 = sphi 0, %s63
      %s81 = sphi 0, %s81
      %s83 = sphi 0, %s81
      %s84 = sphi 0, %s83
      %s98 = sphi 0, %s84
      %s106 = sphi 0, %s108
      %s109 = sphi 0, %s106
      %s110 = sphi 0, %s109
      %s126 = sphi 0, %s110
    $region4: #{temporal_conv_net.1} parent=1 // loop_header_branch
      %15 = sbr.rel (%p13) target = $region8
    $region5: #{temporal_conv_net.1} parent=1 // loop_body
      %s17 = ssub.s32 %s12, 1
      %s18 = ssub.s32 %s12, 2
      %s25 = sadd.s32 1, %s20
      %p26 = scmp.ge.s32.totalorder %s25, 2
      %s27 = scalar_select %p26, 0, %s25
      %s28 = sadd.s32 1, %s19
      %s29 = scalar_select %p26, %s28, %s19
      %p30 = scmp.ge.s32.totalorder %s29, 2
      %s31 = scalar_select %p30, 0, %s29
      %s32 = ssub.s32 %s19, %s31
      %s33 = ssub.s32 %s20, %s27
      %s34 = sor.u32 %s32, %s33
      %p35 = scmp.eq.s32.totalorder %s34, 0
      %s37 = sadd.s32 %s36, 1
      %s38 = scalar_select %p35, %s36, %s37
      %p41 = pneg %p35
      %p42 = scmp.eq.s32.totalorder %s12, 3
      %p43 = por %p41, %p42
      %p44 = scmp.ne.s32.totalorder %s36, %s39
      %p45 = scmp.eq.s32.totalorder %s12, 0
      %p46 = por %p44, %p45
      %p47 = scmp.ne.s32.totalorder %s36, %s39
      %p48 = scmp.eq.s32.totalorder %s17, 3
      %p49 = por %p47, %p48
      %p50 = scmp.ne.s32.totalorder %s39, %s40
      %p51 = scmp.eq.s32.totalorder %s17, 0
      %p52 = por %p50, %p51
      %p53 = scmp.ne.s32.totalorder %s39, %s40
      %p54 = scmp.eq.s32.totalorder %s18, 3
      %p55 = por %p53, %p54
      %p57 = scmp.ne.s32.totalorder %s40, %s56
      %p58 = scmp.eq.s32.totalorder %s18, 0
      %p59 = por %p57, %p58
      %s61 = sadd.s32 %s60, 1
      %p64 = scmp.eq.s32.totalorder %s12, 3
      %p65 = scmp.ne.s32.totalorder %s60, %s62
      %p66 = scmp.eq.s32.totalorder %s12, 0
      %p67 = por %p65, %p66
      %p68 = scmp.ne.s32.totalorder %s60, %s62
      %p69 = scmp.eq.s32.totalorder %s17, 3
      %p70 = por %p68, %p69
      %p71 = scmp.ne.s32.totalorder %s62, %s63
      %p72 = scmp.eq.s32.totalorder %s17, 0
      %p73 = por %p71, %p72
      %p74 = scmp.ne.s32.totalorder %s62, %s63
      %p75 = scmp.eq.s32.totalorder %s18, 3
      %p76 = por %p74, %p75
      %p78 = scmp.ne.s32.totalorder %s63, %s77
      %p79 = scmp.eq.s32.totalorder %s18, 0
      %p80 = por %p78, %p79
      %s82 = sadd.s32 %s81, 1
      %p85 = scmp.eq.s32.totalorder %s12, 3
      %p86 = scmp.ne.s32.totalorder %s81, %s83
      %p87 = scmp.eq.s32.totalorder %s12, 0
      %p88 = por %p86, %p87
      %p89 = scmp.ne.s32.totalorder %s81, %s83
      %p90 = scmp.eq.s32.totalorder %s17, 3
      %p91 = por %p89, %p90
      %p92 = scmp.ne.s32.totalorder %s83, %s84
      %p93 = scmp.eq.s32.totalorder %s17, 0
      %p94 = por %p92, %p93
      %p95 = scmp.ne.s32.totalorder %s83, %s84
      %p96 = scmp.eq.s32.totalorder %s18, 3
      %p97 = por %p95, %p96
      %p99 = scmp.ne.s32.totalorder %s84, %s98
      %p100 = scmp.eq.s32.totalorder %s18, 0
      %p101 = por %p99, %p100
      %s102 = ssub.s32 %s19, %s31
      %s103 = ssub.s32 %s20, %s27
      %s104 = sor.u32 %s102, %s103
      %p105 = scmp.eq.s32.totalorder %s104, 0
      %s107 = sadd.s32 %s106, 1
      %s108 = scalar_select %p105, %s106, %s107
      %p111 = pneg %p105
      %p112 = scmp.eq.s32.totalorder %s12, 3
      %p113 = por %p111, %p112
      %p114 = scmp.ne.s32.totalorder %s106, %s109
      %p115 = scmp.eq.s32.totalorder %s12, 0
      %p116 = por %p114, %p115
      %p117 = scmp.ne.s32.totalorder %s106, %s109
      %p118 = scmp.eq.s32.totalorder %s17, 3
      %p119 = por %p117, %p118
      %p120 = scmp.ne.s32.totalorder %s109, %s110
      %p121 = scmp.eq.s32.totalorder %s17, 0
      %p122 = por %p120, %p121
      %p123 = scmp.ne.s32.totalorder %s109, %s110
      %p124 = scmp.eq.s32.totalorder %s18, 3
      %p125 = por %p123, %p124
      %p127 = scmp.ne.s32.totalorder %s110, %s126
      %p128 = scmp.eq.s32.totalorder %s18, 0
      %p129 = por %p127, %p128
      %p130 = scmp.le.s32.totalorder 1, %s12
      %p131 = scmp.lt.s32.totalorder %s12, 5
      %p132 = pnand %p130, %p131
      %p133 = pneg %p132
      // Predicated region
      $region9: #{temporal_conv_net.1} parent=5 // pred_check
        _
      $region10: #{temporal_conv_net.1} parent=5 // pred_check_branch
        %135 = sbr.rel (%p132) target = $region12
      $region11: #{temporal_conv_net.1} parent=5 // pred_region
        %s136 = ssub.s32 %s12, 1
        // Predicated region
        $region13: #{temporal_conv_net.1} parent=11 // pred_check
          %p137 = pneg %p73
        $region14: #{temporal_conv_net.1} parent=11 // pred_check_branch
          %139 = sbr.rel (%p137) target = $region16
        $region15: #{temporal_conv_net.1} parent=11 // pred_region
          _
        $region16: #{temporal_conv_net.1} parent=11 // pred_fallthru
          _
        // Predicated region
        $region17: #{temporal_conv_net.1} parent=11 // pred_check
          %p140 = pneg %p94
        $region18: #{temporal_conv_net.1} parent=11 // pred_check_branch
          %142 = sbr.rel (%p140) target = $region20
        $region19: #{temporal_conv_net.1} parent=11 // pred_region
          _
        $region20: #{temporal_conv_net.1} parent=11 // pred_fallthru
          _
      $region12: #{temporal_conv_net.1} parent=5 // pred_fallthru
        _
      %p143 = scmp.lt.s32.totalorder %s12, 4
      // Predicated region
      $region21: #{temporal_conv_net.1} parent=5 // pred_check
        %p144 = pneg %p143
      $region22: #{temporal_conv_net.1} parent=5 // pred_check_branch
        %146 = sbr.rel (%p144) target = $region24
      $region23: #{temporal_conv_net.1} parent=5 // pred_region
        // Predicated region
        $region25: #{temporal_conv_net.1} parent=23 // pred_check
          %p147 = pneg %p46
        $region26: #{temporal_conv_net.1} parent=23 // pred_check_branch
          %149 = sbr.rel (%p147) target = $region28
        $region27: #{temporal_conv_net.1} parent=23 // pred_region
          %p150 = scmp.lt.s32.totalorder %s19, 1
          %s151 = scalar_select %p150, %s19, 1
          %p152 = scmp.lt.s32.totalorder %s20, 1
          %s153 = scalar_select %p152, %s20, 1
          %s154 = smul.addr %s151, 2
          %s155 = sadd.s32 %s153, %s154
          %s156 = smul.addr %s155, 8
          %s157 = scalar_lea.vmem %s0, %s156
        $region28: #{temporal_conv_net.1} parent=23 // pred_fallthru
          _
      $region24: #{temporal_conv_net.1} parent=5 // pred_fallthru
        _
      %p158 = scmp.le.s32.totalorder 1, %s12
      %p159 = scmp.lt.s32.totalorder %s12, 5
      %p160 = pnand %p158, %p159
      %p161 = pneg %p160
      // Predicated region
      $region29: #{temporal_conv_net.1} parent=5 // pred_check
        _
      $region30: #{temporal_conv_net.1} parent=5 // pred_check_branch
        %163 = sbr.rel (%p160) target = $region32
      $region31: #{temporal_conv_net.1} parent=5 // pred_region
        %s164 = ssub.s32 %s12, 1
        %p165 = scmp.lt.s32.totalorder %s21, 1
        %s166 = scalar_select %p165, %s21, 1
        %p167 = scmp.lt.s32.totalorder %s22, 1
        %s168 = scalar_select %p167, %s22, 1
        %s169 = smul.addr %s166, 2
        %s170 = sadd.s32 %s168, %s169
        %s171 = smul.addr %s170, 8
        %s172 = scalar_lea.vmem %s0, %s171
        %p173 = pneg %p52
        %p174 = pneg %p49
        %p175 = pneg %p73
        %p176 = pneg %p70
        %p177 = pneg %p94
        %p178 = pneg %p91
        %p179 = pneg %p122
        %p180 = pneg %p119
        %s181 = sand.u32 %s109, 1
        %s182 = scalar_lea.sflag [#allocation9], %s181
        %s183 = sand.u32 %s109, 1
        %s184 = smul.addr %s183, 16
        %s185 = scalar_lea.vmem [#allocation8], %s184
        %p186 = scmp.lt.s32.totalorder %s21, 1
        %s187 = scalar_select %p186, %s21, 1
        %p188 = scmp.lt.s32.totalorder %s22, 1
        %s189 = scalar_select %p188, %s22, 1
        %s190 = smul.addr %s187, 2
        %s191 = sadd.s32 %s189, %s190
        %s192 = smul.addr %s191, 8
        %s193 = scalar_lea.vmem %s0, %s192
        %p194 = scmp.eq.s32.totalorder %s22, 0
        // Predicated region
        $region33: #{temporal_conv_net.1} parent=31 // pred_check
          %p195 = pneg %p194
        $region34: #{temporal_conv_net.1} parent=31 // pred_check_branch
          %197 = sbr.rel (%p195) target = $region36
        $region35: #{temporal_conv_net.1} parent=31 // pred_region
          %198 = vst [vmem:[#allocation2] sm:$0xff] 0.0
          %199 = vst [vmem:[#allocation3] sm:$0xff] 0.0
          %200 = vst [vmem:[#allocation4] sm:$0xff] 0.0
          %201 = vst [vmem:[#allocation5] sm:$0xff] 0.0
          %202 = vst [vmem:[#allocation5 + $0x10] sm:$0xff] 0.0
          %203 = vst [vmem:[#allocation6] sm:$0xff] 0.0
          %204 = vst [vmem:[#allocation6 + $0x10] sm:$0xff] 0.0
          %205 = vst [vmem:[#allocation7] sm:$0xff] 0.0
          %206 = vst [vmem:[#allocation7 + $0x10] sm:$0xff] 0.0
        $region36: #{temporal_conv_net.1} parent=31 // pred_fallthru
          _
        %v207 = vld [vmem:[%s193] sm:$0xff]
        %208 = vst [vmem:[#allocation2 + $0x8] sm:$0xff] %v207
        %v209 = vld [vmem:[#allocation2] sm:$0xff]
        %v210 = vld [vmem:[#allocation2 + $0x8] sm:$0xff]
        %213 = vrot.lane.b32.xlu0 %v209, 127
        %v214 = vpop.permute.xlu0 %213
        %215 = vrot.lane.b32.xlu0 %v210, 127
        %v216 = vpop.permute.xlu0 %215
        %vm217 = vcmask 1039360
        %v218 = vsel %vm217, %v214, %v216
        %220 = vrot.lane.b32.xlu0 %v207, 126
        %v221 = vpop.permute.xlu0 %220
        %222 = vst [vmem:[#allocation2] sm:$0xff] %v210
        %v223 = vld [vmem:[%s1] sm:$0xff]
        %v224 = vld [vmem:[%s1 + $0x8] sm:$0xff]
        %v225 = vld [vmem:[%s2] sm:$0xff]
        %v226 = vld [vmem:[%s2 + $0x8] sm:$0xff]
        %228 = vset.pattern.permute.xlu0 0
        %229 = vperm.xlu0 %228, %v225
        %v230 = vpop.permute.xlu0 %229
        %233 = vset.pattern.permute.xlu0 0
        %234 = vperm.xlu0 %233, %v226
        %v235 = vpop.permute.xlu0 %234
        %237 = vrot.lane.b32.xlu0 %v209, 2
        %v238 = vpop.permute.xlu0 %237
        %239 = vrot.lane.b32.xlu0 %v210, 2
        %v240 = vpop.permute.xlu0 %239
        %241 = vrot.lane.b32.xlu0 %v218, 2
        %v242 = vpop.permute.xlu0 %241
        %243 = vrot.lane.b32.xlu0 %v216, 2
        %v244 = vpop.permute.xlu0 %243
        %245 = vrot.lane.b32.xlu0 %v221, 2
        %v246 = vpop.permute.xlu0 %245
        %vm247 = vcmask 15360
        %v248 = vsel %vm247, %v238, %v240
        %v249 = vsel %vm247, %v242, %v244
        %vm253 = vcmask 195584
        %v255 = vsel %vm253, %v223, 0
        %v258 = vsel %vm253, %v224, 0
        %260 = vmatprep.subr.mxu0 0.0
        %261 = vmatpush1.msra.mxu0 0.0
        %262 = vmatprep.subr.mxu0 0.0
        %263 = vmatpush1.msra.mxu0 0.0
        %264 = vmatprep.subr.mxu0 0.0
        %265 = vmatpush1.msra.mxu0 0.0
        %266 = vmatprep.subr.mxu0 0.0
        %267 = vmatpush1.msra.mxu0 0.0
        %268 = vmatprep.subr.mxu0 0.0
        %269 = vmatpush1.msra.mxu0 0.0
        %270 = vmatprep.subr.mxu0 0.0
        %271 = vmatpush1.msra.mxu0 0.0
        %272 = vmatprep.subr.mxu0 0.0
        %273 = vmatpush1.msra.mxu0 0.0
        %274 = vmatprep.subr.mxu0 0.0
        %275 = vmatpush1.msra.mxu0 0.0
        %276 = vmatprep.subr.mxu0 0.0
        %277 = vmatpush1.msra.mxu0 0.0
        %278 = vmatprep.subr.mxu0 0.0
        %279 = vmatpush1.msra.mxu0 0.0
        %280 = vmatprep.subr.mxu0 0.0
        %281 = vmatpush1.msra.mxu0 0.0
        %282 = vmatprep.subr.mxu0 0.0
        %283 = vmatpush1.msra.mxu0 0.0
        %284 = vmatprep.subr.mxu0 0.0
        %285 = vmatpush1.msra.mxu0 0.0
        %286 = vmatprep.subr.mxu0 0.0
        %287 = vmatpush1.msra.mxu0 %v246
        %288 = vmatprep.subr.mxu0 0.0
        %289 = vmatpush1.msra.mxu0 %v249
        %290 = vmatprep.subr.mxu0 0.0
        %291 = vmatpush1.msra.mxu0 %v248
        %292 = vmatprep.subr.mxu0 0.0
        %293 = vmatpush2.msra.mxu0 0.0
        %294 = vmatprep.subr.mxu0 0.0
        %295 = vmatpush2.msra.mxu0 0.0
        %296 = vmatprep.subr.mxu0 0.0
        %297 = vmatpush2.msra.mxu0 0.0
        %298 = vmatprep.subr.mxu0 0.0
        %299 = vmatpush2.msra.mxu0 0.0
        %300 = vmatprep.subr.mxu0 0.0
        %301 = vmatpush2.msra.mxu0 0.0
        %302 = vmatprep.subr.mxu0 0.0
        %303 = vmatpush2.msra.mxu0 0.0
        %304 = vmatprep.subr.mxu0 0.0
        %305 = vmatpush2.msra.mxu0 0.0
        %306 = vmatprep.subr.mxu0 0.0
        %307 = vmatpush2.msra.mxu0 0.0
        %308 = vmatprep.subr.mxu0 0.0
        %309 = vmatpush2.msra.mxu0 0.0
        %310 = vmatprep.subr.mxu0 0.0
        %311 = vmatpush2.msra.mxu0 0.0
        %312 = vmatprep.subr.mxu0 0.0
        %313 = vmatpush2.msra.mxu0 0.0
        %314 = vmatprep.subr.mxu0 0.0
        %315 = vmatpush2.msra.mxu0 0.0
        %316 = vmatprep.subr.mxu0 0.0
        %317 = vmatpush2.msra.mxu0 0.0
        %318 = vmatprep.subr.mxu0 0.0
        %319 = vmatpush2.msra.mxu0 0.0
        %320 = vmatprep.subr.mxu0 0.0
        %321 = vmatpush2.msra.mxu0 0.0
        %322 = vmatprep.subr.mxu0 0.0
        %323 = vmatpush2.msra.mxu0 0.0
        %324 = vmatprep.mubr.f32.mxu0 0.0
        %325 = vmatmul.mubr.f32.gmra.mxu0 %v255
        %v326 = vpop.f32.mrf.mxu0
        %v327 = vadd.f32 %v230, %v326
        %v328 = vpop.f32.mrf.mxu0
        %329 = vmatprep.mubr.f32.mxu0 0.0
        %330 = vmatmul.mubr.f32.gmra.mxu0 %v258
        %v331 = vpop.f32.mrf.mxu0
        %v332 = vadd.f32 %v235, %v331
        %v333 = vpop.f32.mrf.mxu0
        %334 = vdwg.mxu0
        %v335 = vmax.f32 %v327, 0.0
        %336 = vst [vmem:[#allocation3 + $0x8] sm:$0xff] %v335
        %v337 = vld [vmem:[#allocation3] sm:$0xff]
        %v338 = vld [vmem:[#allocation3 + $0x8] sm:$0xff]
        %341 = vrot.lane.b32.xlu0 %v337, 127
        %v342 = vpop.permute.xlu0 %341
        %343 = vrot.lane.b32.xlu0 %v338, 127
        %v344 = vpop.permute.xlu0 %343
        %v345 = vsel %vm217, %v342, %v344
        %347 = vrot.lane.b32.xlu0 %v335, 126
        %v348 = vpop.permute.xlu0 %347
        %349 = vst [vmem:[#allocation3] sm:$0xff] %v338
        %v350 = vld [vmem:[%s1 + $0x10] sm:$0xff]
        %v351 = vld [vmem:[%s2 + $0x10] sm:$0xff]
        %353 = vset.pattern.permute.xlu0 0
        %354 = vperm.xlu0 %353, %v351
        %v355 = vpop.permute.xlu0 %354
        %357 = vrot.lane.b32.xlu0 %v337, 2
        %v358 = vpop.permute.xlu0 %357
        %359 = vrot.lane.b32.xlu0 %v338, 2
        %v360 = vpop.permute.xlu0 %359
        %361 = vrot.lane.b32.xlu0 %v345, 2
        %v362 = vpop.permute.xlu0 %361
        %363 = vrot.lane.b32.xlu0 %v344, 2
        %v364 = vpop.permute.xlu0 %363
        %365 = vrot.lane.b32.xlu0 %v348, 2
        %v366 = vpop.permute.xlu0 %365
        %v367 = vsel %vm247, %v358, %v360
        %v368 = vsel %vm247, %v362, %v364
        %v373 = vsel %vm253, %v350, 0
        %375 = vmatprep.subr.mxu0 0.0
        %376 = vmatpush1.msra.mxu0 0.0
        %377 = vmatprep.subr.mxu0 0.0
        %378 = vmatpush1.msra.mxu0 0.0
        %379 = vmatprep.subr.mxu0 0.0
        %380 = vmatpush1.msra.mxu0 0.0
        %381 = vmatprep.subr.mxu0 0.0
        %382 = vmatpush1.msra.mxu0 0.0
        %383 = vmatprep.subr.mxu0 0.0
        %384 = vmatpush1.msra.mxu0 0.0
        %385 = vmatprep.subr.mxu0 0.0
        %386 = vmatpush1.msra.mxu0 0.0
        %387 = vmatprep.subr.mxu0 0.0
        %388 = vmatpush1.msra.mxu0 0.0
        %389 = vmatprep.subr.mxu0 0.0
        %390 = vmatpush1.msra.mxu0 0.0
        %391 = vmatprep.subr.mxu0 0.0
        %392 = vmatpush1.msra.mxu0 0.0
        %393 = vmatprep.subr.mxu0 0.0
        %394 = vmatpush1.msra.mxu0 0.0
        %395 = vmatprep.subr.mxu0 0.0
        %396 = vmatpush1.msra.mxu0 0.0
        %397 = vmatprep.subr.mxu0 0.0
        %398 = vmatpush1.msra.mxu0 0.0
        %399 = vmatprep.subr.mxu0 0.0
        %400 = vmatpush1.msra.mxu0 0.0
        %401 = vmatprep.subr.mxu0 0.0
        %402 = vmatpush1.msra.mxu0 %v366
        %403 = vmatprep.subr.mxu0 0.0
        %404 = vmatpush1.msra.mxu0 %v368
        %405 = vmatprep.subr.mxu0 0.0
        %406 = vmatpush1.msra.mxu0 %v367
        %407 = vmatprep.subr.mxu0 0.0
        %408 = vmatpush2.msra.mxu0 0.0
        %409 = vmatprep.subr.mxu0 0.0
        %410 = vmatpush2.msra.mxu0 0.0
        %411 = vmatprep.subr.mxu0 0.0
        %412 = vmatpush2.msra.mxu0 0.0
        %413 = vmatprep.subr.mxu0 0.0
        %414 = vmatpush2.msra.mxu0 0.0
        %415 = vmatprep.subr.mxu0 0.0
        %416 = vmatpush2.msra.mxu0 0.0
        %417 = vmatprep.subr.mxu0 0.0
        %418 = vmatpush2.msra.mxu0 0.0
        %419 = vmatprep.subr.mxu0 0.0
        %420 = vmatpush2.msra.mxu0 0.0
        %421 = vmatprep.subr.mxu0 0.0
        %422 = vmatpush2.msra.mxu0 0.0
        %423 = vmatprep.subr.mxu0 0.0
        %424 = vmatpush2.msra.mxu0 0.0
        %425 = vmatprep.subr.mxu0 0.0
        %426 = vmatpush2.msra.mxu0 0.0
        %427 = vmatprep.subr.mxu0 0.0
        %428 = vmatpush2.msra.mxu0 0.0
        %429 = vmatprep.subr.mxu0 0.0
        %430 = vmatpush2.msra.mxu0 0.0
        %431 = vmatprep.subr.mxu0 0.0
        %432 = vmatpush2.msra.mxu0 0.0
        %433 = vmatprep.subr.mxu0 0.0
        %434 = vmatpush2.msra.mxu0 0.0
        %435 = vmatprep.subr.mxu0 0.0
        %436 = vmatpush2.msra.mxu0 0.0
        %437 = vmatprep.subr.mxu0 0.0
        %438 = vmatpush2.msra.mxu0 0.0
        %439 = vmatprep.mubr.f32.mxu0 0.0
        %440 = vmatmul.mubr.f32.gmra.mxu0 %v373
        %v441 = vpop.f32.mrf.mxu0
        %v442 = vadd.f32 %v355, %v441
        %v443 = vpop.f32.mrf.mxu0
        %444 = vdwg.mxu0
        %v445 = vmax.f32 %v442, 0.0
        %v446 = vadd.f32 %v445, %v332
        %v447 = vmax.f32 %v446, 0.0
        %448 = vst [vmem:[#allocation4 + $0x8] sm:$0xff] %v447
        %v449 = vld [vmem:[#allocation4] sm:$0xff]
        %v450 = vld [vmem:[#allocation4 + $0x8] sm:$0xff]
        %453 = vrot.lane.b32.xlu0 %v449, 126
        %v454 = vpop.permute.xlu0 %453
        %455 = vrot.lane.b32.xlu0 %v450, 126
        %v456 = vpop.permute.xlu0 %455
        %vm457 = vcmask 1031168
        %v458 = vsel %vm457, %v454, %v456
        %460 = vrot.lane.b32.xlu0 %v447, 124
        %v461 = vpop.permute.xlu0 %460
        %462 = vst [vmem:[#allocation4] sm:$0xff] %v450
        %v463 = vld [vmem:[%s1 + $0x18] sm:$0xff]
        %v464 = vld [vmem:[%s1 + $0x20] sm:$0xff]
        %v465 = vld [vmem:[%s1 + $0x28] sm:$0xff]
        %v466 = vld [vmem:[%s1 + $0x30] sm:$0xff]
        %v467 = vld [vmem:[%s2 + $0x18] sm:$0xff]
        %v468 = vld [vmem:[%s2 + $0x20] sm:$0xff]
        %v469 = vld [vmem:[%s2 + $0x28] sm:$0xff]
        %v470 = vld [vmem:[%s2 + $0x30] sm:$0xff]
        %472 = vset.pattern.permute.xlu0 0
        %473 = vperm.xlu0 %472, %v467
        %v474 = vpop.permute.xlu0 %473
        %477 = vset.pattern.permute.xlu0 0
        %478 = vperm.xlu0 %477, %v468
        %v479 = vpop.permute.xlu0 %478
        %482 = vset.pattern.permute.xlu0 0
        %483 = vperm.xlu0 %482, %v469
        %v484 = vpop.permute.xlu0 %483
        %487 = vset.pattern.permute.xlu0 0
        %488 = vperm.xlu0 %487, %v470
        %v489 = vpop.permute.xlu0 %488
        %491 = vrot.lane.b32.xlu0 %v449, 4
        %v492 = vpop.permute.xlu0 %491
        %493 = vrot.lane.b32.xlu0 %v450, 4
        %v494 = vpop.permute.xlu0 %493
        %495 = vrot.lane.b32.xlu0 %v458, 4
        %v496 = vpop.permute.xlu0 %495
        %497 = vrot.lane.b32.xlu0 %v456, 4
        %v498 = vpop.permute.xlu0 %497
        %499 = vrot.lane.b32.xlu0 %v461, 4
        %v500 = vpop.permute.xlu0 %499
        %vm501 = vcmask 31744
        %v502 = vsel %vm501, %v492, %v494
        %v503 = vsel %vm501, %v496, %v498
        %v508 = vsel %vm253, %v463, 0
        %v511 = vsel %vm253, %v464, 0
        %v514 = vsel %vm253, %v465, 0
        %v517 = vsel %vm253, %v466, 0
        %519 = vmatprep.subr.mxu0 0.0
        %520 = vmatpush1.msra.mxu0 0.0
        %521 = vmatprep.subr.mxu0 0.0
        %522 = vmatpush1.msra.mxu0 0.0
        %523 = vmatprep.subr.mxu0 0.0
        %524 = vmatpush1.msra.mxu0 0.0
        %525 = vmatprep.subr.mxu0 0.0
        %526 = vmatpush1.msra.mxu0 0.0
        %527 = vmatprep.subr.mxu0 0.0
        %528 = vmatpush1.msra.mxu0 0.0
        %529 = vmatprep.subr.mxu0 0.0
        %530 = vmatpush1.msra.mxu0 0.0
        %531 = vmatprep.subr.mxu0 0.0
        %532 = vmatpush1.msra.mxu0 0.0
        %533 = vmatprep.subr.mxu0 0.0
        %534 = vmatpush1.msra.mxu0 0.0
        %535 = vmatprep.subr.mxu0 0.0
        %536 = vmatpush1.msra.mxu0 0.0
        %537 = vmatprep.subr.mxu0 0.0
        %538 = vmatpush1.msra.mxu0 0.0
        %539 = vmatprep.subr.mxu0 0.0
        %540 = vmatpush1.msra.mxu0 0.0
        %541 = vmatprep.subr.mxu0 0.0
        %542 = vmatpush1.msra.mxu0 0.0
        %543 = vmatprep.subr.mxu0 0.0
        %544 = vmatpush1.msra.mxu0 0.0
        %545 = vmatprep.subr.mxu0 0.0
        %546 = vmatpush1.msra.mxu0 %v500
        %547 = vmatprep.subr.mxu0 0.0
        %548 = vmatpush1.msra.mxu0 %v503
        %549 = vmatprep.subr.mxu0 0.0
        %550 = vmatpush1.msra.mxu0 %v502
        %551 = vmatprep.subr.mxu0 0.0
        %552 = vmatpush2.msra.mxu0 0.0
        %553 = vmatprep.subr.mxu0 0.0
        %554 = vmatpush2.msra.mxu0 0.0
        %555 = vmatprep.subr.mxu0 0.0
        %556 = vmatpush2.msra.mxu0 0.0
        %557 = vmatprep.subr.mxu0 0.0
        %558 = vmatpush2.msra.mxu0 0.0
        %559 = vmatprep.subr.mxu0 0.0
        %560 = vmatpush2.msra.mxu0 0.0
        %561 = vmatprep.subr.mxu0 0.0
        %562 = vmatpush2.msra.mxu0 0.0
        %563 = vmatprep.subr.mxu0 0.0
        %564 = vmatpush2.msra.mxu0 0.0
        %565 = vmatprep.subr.mxu0 0.0
        %566 = vmatpush2.msra.mxu0 0.0
        %567 = vmatprep.subr.mxu0 0.0
        %568 = vmatpush2.msra.mxu0 0.0
        %569 = vmatprep.subr.mxu0 0.0
        %570 = vmatpush2.msra.mxu0 0.0
        %571 = vmatprep.subr.mxu0 0.0
        %572 = vmatpush2.msra.mxu0 0.0
        %573 = vmatprep.subr.mxu0 0.0
        %574 = vmatpush2.msra.mxu0 0.0
        %575 = vmatprep.subr.mxu0 0.0
        %576 = vmatpush2.msra.mxu0 0.0
        %577 = vmatprep.subr.mxu0 0.0
        %578 = vmatpush2.msra.mxu0 0.0
        %579 = vmatprep.subr.mxu0 0.0
        %580 = vmatpush2.msra.mxu0 0.0
        %581 = vmatprep.subr.mxu0 0.0
        %582 = vmatpush2.msra.mxu0 0.0
        %583 = vmatprep.mubr.f32.mxu0 0.0
        %584 = vmatmul.mubr.f32.gmra.mxu0 %v508
        %v585 = vpop.f32.mrf.mxu0
        %v586 = vadd.f32 %v474, %v585
        %v587 = vpop.f32.mrf.mxu0
        %588 = vmatprep.mubr.f32.mxu0 0.0
        %589 = vmatmul.mubr.f32.gmra.mxu0 %v511
        %v590 = vpop.f32.mrf.mxu0
        %v591 = vadd.f32 %v479, %v590
        %v592 = vpop.f32.mrf.mxu0
        %593 = vmatprep.mubr.f32.mxu0 0.0
        %594 = vmatmul.mubr.f32.gmra.mxu0 %v514
        %v595 = vpop.f32.mrf.mxu0
        %v596 = vadd.f32 %v484, %v595
        %v597 = vpop.f32.mrf.mxu0
        %598 = vmatprep.mubr.f32.mxu0 0.0
        %599 = vmatmul.mubr.f32.gmra.mxu0 %v517
        %v600 = vpop.f32.mrf.mxu0
        %v601 = vadd.f32 %v489, %v600
        %v602 = vpop.f32.mrf.mxu0
        %603 = vdwg.mxu0
        %v604 = vmax.f32 %v586, 0.0
        %v605 = vmax.f32 %v591, 0.0
        %606 = vst [vmem:[#allocation5 + $0x8] sm:$0xff] %v604
        %607 = vst [vmem:[#allocation5 + $0x18] sm:$0xff] %v605
        %v608 = vld [vmem:[#allocation5] sm:$0xff]
        %v609 = vld [vmem:[#allocation5 + $0x8] sm:$0xff]
        %v610 = vld [vmem:[#allocation5 + $0x10] sm:$0xff]
        %v611 = vld [vmem:[#allocation5 + $0x18] sm:$0xff]
        %616 = vrot.lane.b32.xlu0 %v608, 126
        %v617 = vpop.permute.xlu0 %616
        %618 = vrot.lane.b32.xlu0 %v609, 126
        %v619 = vpop.permute.xlu0 %618
        %620 = vrot.lane.b32.xlu0 %v610, 126
        %v621 = vpop.permute.xlu0 %620
        %622 = vrot.lane.b32.xlu0 %v611, 126
        %v623 = vpop.permute.xlu0 %622
        %v624 = vsel %vm457, %v617, %v619
        %v625 = vsel %vm457, %v621, %v623
        %628 = vrot.lane.b32.xlu0 %v604, 124
        %v629 = vpop.permute.xlu0 %628
        %630 = vrot.lane.b32.xlu0 %v605, 124
        %v631 = vpop.permute.xlu0 %630
        %632 = vst [vmem:[#allocation5] sm:$0xff] %v609
        %633 = vst [vmem:[#allocation5 + $0x10] sm:$0xff] %v611
        %v634 = vld [vmem:[%s1 + $0x38] sm:$0xff]
        %v635 = vld [vmem:[%s1 + $0x40] sm:$0xff]
        %v636 = vld [vmem:[%s2 + $0x38] sm:$0xff]
        %v637 = vld [vmem:[%s2 + $0x40] sm:$0xff]
        %639 = vset.pattern.permute.xlu0 0
        %640 = vperm.xlu0 %639, %v636
        %v641 = vpop.permute.xlu0 %640
        %644 = vset.pattern.permute.xlu0 0
        %645 = vperm.xlu0 %644, %v637
        %v646 = vpop.permute.xlu0 %645
        %648 = vrot.lane.b32.xlu0 %v608, 4
        %v649 = vpop.permute.xlu0 %648
        %650 = vrot.lane.b32.xlu0 %v609, 4
        %v651 = vpop.permute.xlu0 %650
        %652 = vrot.lane.b32.xlu0 %v610, 4
        %v653 = vpop.permute.xlu0 %652
        %654 = vrot.lane.b32.xlu0 %v611, 4
        %v655 = vpop.permute.xlu0 %654
        %656 = vrot.lane.b32.xlu0 %v624, 4
        %v657 = vpop.permute.xlu0 %656
        %658 = vrot.lane.b32.xlu0 %v619, 4
        %v659 = vpop.permute.xlu0 %658
        %660 = vrot.lane.b32.xlu0 %v625, 4
        %v661 = vpop.permute.xlu0 %660
        %662 = vrot.lane.b32.xlu0 %v623, 4
        %v663 = vpop.permute.xlu0 %662
        %664 = vrot.lane.b32.xlu0 %v629, 4
        %v665 = vpop.permute.xlu0 %664
        %666 = vrot.lane.b32.xlu0 %v631, 4
        %v667 = vpop.permute.xlu0 %666
        %v668 = vsel %vm501, %v649, %v651
        %v669 = vsel %vm501, %v653, %v655
        %v670 = vsel %vm501, %v657, %v659
        %v671 = vsel %vm501, %v661, %v663
        %vm678 = vcmask 392192
        %v680 = vsel %vm678, %v634, 0
        %v683 = vsel %vm678, %v635, 0
        %685 = vmatprep.subr.mxu0 0.0
        %686 = vmatpush1.msra.mxu0 0.0
        %687 = vmatprep.subr.mxu0 0.0
        %688 = vmatpush1.msra.mxu0 0.0
        %689 = vmatprep.subr.mxu0 0.0
        %690 = vmatpush1.msra.mxu0 0.0
        %691 = vmatprep.subr.mxu0 0.0
        %692 = vmatpush1.msra.mxu0 0.0
        %693 = vmatprep.subr.mxu0 0.0
        %694 = vmatpush1.msra.mxu0 0.0
        %695 = vmatprep.subr.mxu0 0.0
        %696 = vmatpush1.msra.mxu0 0.0
        %697 = vmatprep.subr.mxu0 0.0
        %698 = vmatpush1.msra.mxu0 0.0
        %699 = vmatprep.subr.mxu0 0.0
        %700 = vmatpush1.msra.mxu0 0.0
        %701 = vmatprep.subr.mxu0 0.0
        %702 = vmatpush1.msra.mxu0 0.0
        %703 = vmatprep.subr.mxu0 0.0
        %704 = vmatpush1.msra.mxu0 0.0
        %705 = vmatprep.subr.mxu0 0.0
        %706 = vmatpush1.msra.mxu0 %v667
        %707 = vmatprep.subr.mxu0 0.0
        %708 = vmatpush1.msra.mxu0 %v665
        %709 = vmatprep.subr.mxu0 0.0
        %710 = vmatpush1.msra.mxu0 %v671
        %711 = vmatprep.subr.mxu0 0.0
        %712 = vmatpush1.msra.mxu0 %v670
        %713 = vmatprep.subr.mxu0 0.0
        %714 = vmatpush1.msra.mxu0 %v669
        %715 = vmatprep.subr.mxu0 0.0
        %716 = vmatpush1.msra.mxu0 %v668
        %717 = vmatprep.subr.mxu0 0.0
        %718 = vmatpush2.msra.mxu0 0.0
        %719 = vmatprep.subr.mxu0 0.0
        %720 = vmatpush2.msra.mxu0 0.0
        %721 = vmatprep.subr.mxu0 0.0
        %722 = vmatpush2.msra.mxu0 0.0
        %723 = vmatprep.subr.mxu0 0.0
        %724 = vmatpush2.msra.mxu0 0.0
        %725 = vmatprep.subr.mxu0 0.0
        %726 = vmatpush2.msra.mxu0 0.0
        %727 = vmatprep.subr.mxu0 0.0
        %728 = vmatpush2.msra.mxu0 0.0
        %729 = vmatprep.subr.mxu0 0.0
        %730 = vmatpush2.msra.mxu0 0.0
        %731 = vmatprep.subr.mxu0 0.0
        %732 = vmatpush2.msra.mxu0 0.0
        %733 = vmatprep.subr.mxu0 0.0
        %734 = vmatpush2.msra.mxu0 0.0
        %735 = vmatprep.subr.mxu0 0.0
        %736 = vmatpush2.msra.mxu0 0.0
        %737 = vmatprep.subr.mxu0 0.0
        %738 = vmatpush2.msra.mxu0 0.0
        %739 = vmatprep.subr.mxu0 0.0
        %740 = vmatpush2.msra.mxu0 0.0
        %741 = vmatprep.subr.mxu0 0.0
        %742 = vmatpush2.msra.mxu0 0.0
        %743 = vmatprep.subr.mxu0 0.0
        %744 = vmatpush2.msra.mxu0 0.0
        %745 = vmatprep.subr.mxu0 0.0
        %746 = vmatpush2.msra.mxu0 0.0
        %747 = vmatprep.subr.mxu0 0.0
        %748 = vmatpush2.msra.mxu0 0.0
        %749 = vmatprep.mubr.f32.mxu0 0.0
        %750 = vmatmul.mubr.f32.gmra.mxu0 %v680
        %v751 = vpop.f32.mrf.mxu0
        %v752 = vadd.f32 %v641, %v751
        %v753 = vpop.f32.mrf.mxu0
        %754 = vmatprep.mubr.f32.mxu0 0.0
        %755 = vmatmul.mubr.f32.gmra.mxu0 %v683
        %v756 = vpop.f32.mrf.mxu0
        %v757 = vadd.f32 %v646, %v756
        %v758 = vpop.f32.mrf.mxu0
        %759 = vdwg.mxu0
        %v760 = vmax.f32 %v752, 0.0
        %v761 = vmax.f32 %v757, 0.0
        %v762 = vadd.f32 %v760, %v596
        %v763 = vadd.f32 %v761, %v601
        %v764 = vmax.f32 %v762, 0.0
        %v765 = vmax.f32 %v763, 0.0
        %766 = vst [vmem:[#allocation6 + $0x8] sm:$0xff] %v764
        %767 = vst [vmem:[#allocation6 + $0x18] sm:$0xff] %v765
        %v768 = vld [vmem:[#allocation6] sm:$0xff]
        %v769 = vld [vmem:[#allocation6 + $0x8] sm:$0xff]
        %v770 = vld [vmem:[#allocation6 + $0x10] sm:$0xff]
        %v771 = vld [vmem:[#allocation6 + $0x18] sm:$0xff]
        %776 = vrot.lane.b32.xlu0 %v768, 124
        %v777 = vpop.permute.xlu0 %776
        %778 = vrot.lane.b32.xlu0 %v769, 124
        %v779 = vpop.permute.xlu0 %778
        %780 = vrot.lane.b32.xlu0 %v770, 124
        %v781 = vpop.permute.xlu0 %780
        %782 = vrot.lane.b32.xlu0 %v771, 124
        %v783 = vpop.permute.xlu0 %782
        %vm784 = vcmask 1014784
        %v785 = vsel %vm784, %v777, %v779
        %v786 = vsel %vm784, %v781, %v783
        %789 = vrot.lane.b32.xlu0 %v764, 120
        %v790 = vpop.permute.xlu0 %789
        %791 = vrot.lane.b32.xlu0 %v765, 120
        %v792 = vpop.permute.xlu0 %791
        %793 = vst [vmem:[#allocation6] sm:$0xff] %v769
        %794 = vst [vmem:[#allocation6 + $0x10] sm:$0xff] %v771
        %v795 = vld [vmem:[%s1 + $0x48] sm:$0xff]
        %v796 = vld [vmem:[%s1 + $0x50] sm:$0xff]
        %v797 = vld [vmem:[%s2 + $0x48] sm:$0xff]
        %v798 = vld [vmem:[%s2 + $0x50] sm:$0xff]
        %800 = vset.pattern.permute.xlu0 0
        %801 = vperm.xlu0 %800, %v797
        %v802 = vpop.permute.xlu0 %801
        %805 = vset.pattern.permute.xlu0 0
        %806 = vperm.xlu0 %805, %v798
        %v807 = vpop.permute.xlu0 %806
        %809 = vrot.lane.b32.xlu0 %v768, 8
        %v810 = vpop.permute.xlu0 %809
        %811 = vrot.lane.b32.xlu0 %v769, 8
        %v812 = vpop.permute.xlu0 %811
        %813 = vrot.lane.b32.xlu0 %v770, 8
        %v814 = vpop.permute.xlu0 %813
        %815 = vrot.lane.b32.xlu0 %v771, 8
        %v816 = vpop.permute.xlu0 %815
        %817 = vrot.lane.b32.xlu0 %v785, 8
        %v818 = vpop.permute.xlu0 %817
        %819 = vrot.lane.b32.xlu0 %v779, 8
        %v820 = vpop.permute.xlu0 %819
        %821 = vrot.lane.b32.xlu0 %v786, 8
        %v822 = vpop.permute.xlu0 %821
        %823 = vrot.lane.b32.xlu0 %v783, 8
        %v824 = vpop.permute.xlu0 %823
        %825 = vrot.lane.b32.xlu0 %v790, 8
        %v826 = vpop.permute.xlu0 %825
        %827 = vrot.lane.b32.xlu0 %v792, 8
        %v828 = vpop.permute.xlu0 %827
        %vm829 = vcmask 64512
        %v830 = vsel %vm829, %v810, %v812
        %v831 = vsel %vm829, %v814, %v816
        %v832 = vsel %vm829, %v818, %v820
        %v833 = vsel %vm829, %v822, %v824
        %v841 = vsel %vm678, %v795, 0
        %v844 = vsel %vm678, %v796, 0
        %846 = vmatprep.subr.mxu0 0.0
        %847 = vmatpush1.msra.mxu0 0.0
        %848 = vmatprep.subr.mxu0 0.0
        %849 = vmatpush1.msra.mxu0 0.0
        %850 = vmatprep.subr.mxu0 0.0
        %851 = vmatpush1.msra.mxu0 0.0
        %852 = vmatprep.subr.mxu0 0.0
        %853 = vmatpush1.msra.mxu0 0.0
        %854 = vmatprep.subr.mxu0 0.0
        %855 = vmatpush1.msra.mxu0 0.0
        %856 = vmatprep.subr.mxu0 0.0
        %857 = vmatpush1.msra.mxu0 0.0
        %858 = vmatprep.subr.mxu0 0.0
        %859 = vmatpush1.msra.mxu0 0.0
        %860 = vmatprep.subr.mxu0 0.0
        %861 = vmatpush1.msra.mxu0 0.0
        %862 = vmatprep.subr.mxu0 0.0
        %863 = vmatpush1.msra.mxu0 0.0
        %864 = vmatprep.subr.mxu0 0.0
        %865 = vmatpush1.msra.mxu0 0.0
        %866 = vmatprep.subr.mxu0 0.0
        %867 = vmatpush1.msra.mxu0 %v828
        %868 = vmatprep.subr.mxu0 0.0
        %869 = vmatpush1.msra.mxu0 %v826
        %870 = vmatprep.subr.mxu0 0.0
        %871 = vmatpush1.msra.mxu0 %v833
        %872 = vmatprep.subr.mxu0 0.0
        %873 = vmatpush1.msra.mxu0 %v832
        %874 = vmatprep.subr.mxu0 0.0
        %875 = vmatpush1.msra.mxu0 %v831
        %876 = vmatprep.subr.mxu0 0.0
        %877 = vmatpush1.msra.mxu0 %v830
        %878 = vmatprep.subr.mxu0 0.0
        %879 = vmatpush2.msra.mxu0 0.0
        %880 = vmatprep.subr.mxu0 0.0
        %881 = vmatpush2.msra.mxu0 0.0
        %882 = vmatprep.subr.mxu0 0.0
        %883 = vmatpush2.msra.mxu0 0.0
        %884 = vmatprep.subr.mxu0 0.0
        %885 = vmatpush2.msra.mxu0 0.0
        %886 = vmatprep.subr.mxu0 0.0
        %887 = vmatpush2.msra.mxu0 0.0
        %888 = vmatprep.subr.mxu0 0.0
        %889 = vmatpush2.msra.mxu0 0.0
        %890 = vmatprep.subr.mxu0 0.0
        %891 = vmatpush2.msra.mxu0 0.0
        %892 = vmatprep.subr.mxu0 0.0
        %893 = vmatpush2.msra.mxu0 0.0
        %894 = vmatprep.subr.mxu0 0.0
        %895 = vmatpush2.msra.mxu0 0.0
        %896 = vmatprep.subr.mxu0 0.0
        %897 = vmatpush2.msra.mxu0 0.0
        %898 = vmatprep.subr.mxu0 0.0
        %899 = vmatpush2.msra.mxu0 0.0
        %900 = vmatprep.subr.mxu0 0.0
        %901 = vmatpush2.msra.mxu0 0.0
        %902 = vmatprep.subr.mxu0 0.0
        %903 = vmatpush2.msra.mxu0 0.0
        %904 = vmatprep.subr.mxu0 0.0
        %905 = vmatpush2.msra.mxu0 0.0
        %906 = vmatprep.subr.mxu0 0.0
        %907 = vmatpush2.msra.mxu0 0.0
        %908 = vmatprep.subr.mxu0 0.0
        %909 = vmatpush2.msra.mxu0 0.0
        %910 = vmatprep.mubr.f32.mxu0 0.0
        %911 = vmatmul.mubr.f32.gmra.mxu0 %v841
        %v912 = vpop.f32.mrf.mxu0
        %v913 = vadd.f32 %v802, %v912
        %v914 = vpop.f32.mrf.mxu0
        %915 = vmatprep.mubr.f32.mxu0 0.0
        %916 = vmatmul.mubr.f32.gmra.mxu0 %v844
        %v917 = vpop.f32.mrf.mxu0
        %v918 = vadd.f32 %v807, %v917
        %v919 = vpop.f32.mrf.mxu0
        %920 = vdwg.mxu0
        %v921 = vmax.f32 %v913, 0.0
        %v922 = vmax.f32 %v918, 0.0
        %923 = vst [vmem:[#allocation7 + $0x8] sm:$0xff] %v921
        %924 = vst [vmem:[#allocation7 + $0x18] sm:$0xff] %v922
        %v925 = vld [vmem:[#allocation7] sm:$0xff]
        %v926 = vld [vmem:[#allocation7 + $0x8] sm:$0xff]
        %v927 = vld [vmem:[#allocation7 + $0x10] sm:$0xff]
        %v928 = vld [vmem:[#allocation7 + $0x18] sm:$0xff]
        %933 = vrot.lane.b32.xlu0 %v925, 124
        %v934 = vpop.permute.xlu0 %933
        %935 = vrot.lane.b32.xlu0 %v926, 124
        %v936 = vpop.permute.xlu0 %935
        %937 = vrot.lane.b32.xlu0 %v927, 124
        %v938 = vpop.permute.xlu0 %937
        %939 = vrot.lane.b32.xlu0 %v928, 124
        %v940 = vpop.permute.xlu0 %939
        %v941 = vsel %vm784, %v934, %v936
        %v942 = vsel %vm784, %v938, %v940
        %945 = vrot.lane.b32.xlu0 %v921, 120
        %v946 = vpop.permute.xlu0 %945
        %947 = vrot.lane.b32.xlu0 %v922, 120
        %v948 = vpop.permute.xlu0 %947
        %949 = vst [vmem:[#allocation7] sm:$0xff] %v926
        %950 = vst [vmem:[#allocation7 + $0x10] sm:$0xff] %v928
        %v951 = vld [vmem:[%s1 + $0x58] sm:$0xff]
        %v952 = vld [vmem:[%s1 + $0x60] sm:$0xff]
        %v953 = vld [vmem:[%s2 + $0x58] sm:$0xff]
        %v954 = vld [vmem:[%s2 + $0x60] sm:$0xff]
        %956 = vset.pattern.permute.xlu0 0
        %957 = vperm.xlu0 %956, %v953
        %v958 = vpop.permute.xlu0 %957
        %961 = vset.pattern.permute.xlu0 0
        %962 = vperm.xlu0 %961, %v954
        %v963 = vpop.permute.xlu0 %962
        %965 = vrot.lane.b32.xlu0 %v925, 8
        %v966 = vpop.permute.xlu0 %965
        %967 = vrot.lane.b32.xlu0 %v926, 8
        %v968 = vpop.permute.xlu0 %967
        %969 = vrot.lane.b32.xlu0 %v927, 8
        %v970 = vpop.permute.xlu0 %969
        %971 = vrot.lane.b32.xlu0 %v928, 8
        %v972 = vpop.permute.xlu0 %971
        %973 = vrot.lane.b32.xlu0 %v941, 8
        %v974 = vpop.permute.xlu0 %973
        %975 = vrot.lane.b32.xlu0 %v936, 8
        %v976 = vpop.permute.xlu0 %975
        %977 = vrot.lane.b32.xlu0 %v942, 8
        %v978 = vpop.permute.xlu0 %977
        %979 = vrot.lane.b32.xlu0 %v940, 8
        %v980 = vpop.permute.xlu0 %979
        %981 = vrot.lane.b32.xlu0 %v946, 8
        %v982 = vpop.permute.xlu0 %981
        %983 = vrot.lane.b32.xlu0 %v948, 8
        %v984 = vpop.permute.xlu0 %983
        %v985 = vsel %vm829, %v966, %v968
        %v986 = vsel %vm829, %v970, %v972
        %v987 = vsel %vm829, %v974, %v976
        %v988 = vsel %vm829, %v978, %v980
        %v996 = vsel %vm678, %v951, 0
        %v999 = vsel %vm678, %v952, 0
        %1001 = vmatprep.subr.mxu0 0.0
        %1002 = vmatpush1.msra.mxu0 0.0
        %1003 = vmatprep.subr.mxu0 0.0
        %1004 = vmatpush1.msra.mxu0 0.0
        %1005 = vmatprep.subr.mxu0 0.0
        %1006 = vmatpush1.msra.mxu0 0.0
        %1007 = vmatprep.subr.mxu0 0.0
        %1008 = vmatpush1.msra.mxu0 0.0
        %1009 = vmatprep.subr.mxu0 0.0
        %1010 = vmatpush1.msra.mxu0 0.0
        %1011 = vmatprep.subr.mxu0 0.0
        %1012 = vmatpush1.msra.mxu0 0.0
        %1013 = vmatprep.subr.mxu0 0.0
        %1014 = vmatpush1.msra.mxu0 0.0
        %1015 = vmatprep.subr.mxu0 0.0
        %1016 = vmatpush1.msra.mxu0 0.0
        %1017 = vmatprep.subr.mxu0 0.0
        %1018 = vmatpush1.msra.mxu0 0.0
        %1019 = vmatprep.subr.mxu0 0.0
        %1020 = vmatpush1.msra.mxu0 0.0
        %1021 = vmatprep.subr.mxu0 0.0
        %1022 = vmatpush1.msra.mxu0 %v984
        %1023 = vmatprep.subr.mxu0 0.0
        %1024 = vmatpush1.msra.mxu0 %v982
        %1025 = vmatprep.subr.mxu0 0.0
        %1026 = vmatpush1.msra.mxu0 %v988
        %1027 = vmatprep.subr.mxu0 0.0
        %1028 = vmatpush1.msra.mxu0 %v987
        %1029 = vmatprep.subr.mxu0 0.0
        %1030 = vmatpush1.msra.mxu0 %v986
        %1031 = vmatprep.subr.mxu0 0.0
        %1032 = vmatpush1.msra.mxu0 %v985
        %1033 = vmatprep.subr.mxu0 0.0
        %1034 = vmatpush2.msra.mxu0 0.0
        %1035 = vmatprep.subr.mxu0 0.0
        %1036 = vmatpush2.msra.mxu0 0.0
        %1037 = vmatprep.subr.mxu0 0.0
        %1038 = vmatpush2.msra.mxu0 0.0
        %1039 = vmatprep.subr.mxu0 0.0
        %1040 = vmatpush2.msra.mxu0 0.0
        %1041 = vmatprep.subr.mxu0 0.0
        %1042 = vmatpush2.msra.mxu0 0.0
        %1043 = vmatprep.subr.mxu0 0.0
        %1044 = vmatpush2.msra.mxu0 0.0
        %1045 = vmatprep.subr.mxu0 0.0
        %1046 = vmatpush2.msra.mxu0 0.0
        %1047 = vmatprep.subr.mxu0 0.0
        %1048 = vmatpush2.msra.mxu0 0.0
        %1049 = vmatprep.subr.mxu0 0.0
        %1050 = vmatpush2.msra.mxu0 0.0
        %1051 = vmatprep.subr.mxu0 0.0
        %1052 = vmatpush2.msra.mxu0 0.0
        %1053 = vmatprep.subr.mxu0 0.0
        %1054 = vmatpush2.msra.mxu0 0.0
        %1055 = vmatprep.subr.mxu0 0.0
        %1056 = vmatpush2.msra.mxu0 0.0
        %1057 = vmatprep.subr.mxu0 0.0
        %1058 = vmatpush2.msra.mxu0 0.0
        %1059 = vmatprep.subr.mxu0 0.0
        %1060 = vmatpush2.msra.mxu0 0.0
        %1061 = vmatprep.subr.mxu0 0.0
        %1062 = vmatpush2.msra.mxu0 0.0
        %1063 = vmatprep.subr.mxu0 0.0
        %1064 = vmatpush2.msra.mxu0 0.0
        %1065 = vmatprep.mubr.f32.mxu0 0.0
        %1066 = vmatmul.mubr.f32.gmra.mxu0 %v996
        %v1067 = vpop.f32.mrf.mxu0
        %v1068 = vadd.f32 %v958, %v1067
        %v1069 = vpop.f32.mrf.mxu0
        %1070 = vmatprep.mubr.f32.mxu0 0.0
        %1071 = vmatmul.mubr.f32.gmra.mxu0 %v999
        %v1072 = vpop.f32.mrf.mxu0
        %v1073 = vadd.f32 %v963, %v1072
        %v1074 = vpop.f32.mrf.mxu0
        %1075 = vdwg.mxu0
        %v1076 = vmax.f32 %v1068, 0.0
        %v1077 = vmax.f32 %v1073, 0.0
        %v1078 = vadd.f32 %v1076, %v764
        %v1079 = vadd.f32 %v1077, %v765
        %v1080 = vmax.f32 %v1078, 0.0
        %v1081 = vmax.f32 %v1079, 0.0
        %1082 = vst [vmem:[%s185] sm:$0xff] %v1080
        %1083 = vst [vmem:[%s185 + $0x8] sm:$0xff] %v1081
        %s1084 = sand.u32 %s109, 1
        %s1085 = scalar_lea.sflag [#allocation9], %s1084
        %s1086 = sand.u32 %s109, 1
        %s1087 = smul.addr %s1086, 16
        %s1088 = scalar_lea.vmem [#allocation8], %s1087
        // Predicated region
        $region37: #{temporal_conv_net.1} parent=31 // pred_check
          %p1089 = pneg %p119
        $region38: #{temporal_conv_net.1} parent=31 // pred_check_branch
          %1091 = sbr.rel (%p1089) target = $region40
        $region39: #{temporal_conv_net.1} parent=31 // pred_region
          %s1093 = ssub.s32 256, 256
          %1094 = vsyncadd %s1085, %s1093
          %s1095 = smul.addr %s21, 4
          %s1096 = sadd.s32 %s22, %s1095
          %s1097 = smul.addr %s1096, 128
          %s1098 = scalar_lea.hbm %s3, %s1097
          %s1099 = sshll.u32 %s1088, 4
          %s1100 = int_to_ptr.vmem [resolvable:$true] %s1099
          %1105 = dma.vmem_to_hbm [thread:$0]  %s1100, 256, %s1098, %s1085, 128, 256, 8
        $region40: #{temporal_conv_net.1} parent=31 // pred_fallthru
          _
      $region32: #{temporal_conv_net.1} parent=5 // pred_fallthru
        _
      %p1106 = scmp.le.s32.totalorder 2, %s12
      // Predicated region
      $region41: #{temporal_conv_net.1} parent=5 // pred_check
        %p1107 = pneg %p1106
      $region42: #{temporal_conv_net.1} parent=5 // pred_check_branch
        %1109 = sbr.rel (%p1107) target = $region44
      $region43: #{temporal_conv_net.1} parent=5 // pred_region
        %s1110 = ssub.s32 %s12, 2
        // Predicated region
        $region45: #{temporal_conv_net.1} parent=43 // pred_check
          %p1111 = pneg %p125
        $region46: #{temporal_conv_net.1} parent=43 // pred_check_branch
          %1113 = sbr.rel (%p1111) target = $region48
        $region47: #{temporal_conv_net.1} parent=43 // pred_region
          %s1114 = sand.u32 %s110, 1
          %s1115 = scalar_lea.sflag [#allocation9], %s1114
          %s1116 = sand.u32 %s110, 1
          %s1117 = smul.addr %s1116, 16
          %s1118 = scalar_lea.vmem [#allocation8], %s1117
          %1119 = dma.done %s1115, 256
        $region48: #{temporal_conv_net.1} parent=43 // pred_fallthru
          _
      $region44: #{temporal_conv_net.1} parent=5 // pred_fallthru
        _
    $region6: #{temporal_conv_net.1} parent=1 // loop_footer
      %s16 = sadd.s32 1, %s12
    $region7: #{temporal_conv_net.1} parent=1 // loop_footer_branch
      %11 = sbr.rel target = $region3
    $region8: #{temporal_conv_net.1} parent=1 // loop_exit
      _
    %1120 = vsyncpa [#allocation9], 1
    %s1121 = scalar_lea.sflag [#allocation9], 1
    %1122 = vsyncpa %s1121, 1

</llo_original>
